<compile_context>
chip_gen: v6e
topology: v6e:2x2x1
jax: 0.10.0
libtpu: 0.0.40
codegen_flags: <defaults>
</compile_context>

<pallas_src>
import functools
import math

import jax
import jax.numpy as jnp
import numpy as np
from jax import lax
from jax.experimental import pallas as pl
from jax.experimental.pallas import tpu as pltpu


# ----------------------------- Pallas kernel -------------------------------

def _convtr_tile_kernel(x_ref, w_ref, b_ref, o_ref, *, kh, d0, fo, tt):
    # x_ref: (1, Fp, TT, KW*Cin)   halo'd input tile, time taps pre-interleaved
    # w_ref: (KH, KW*Cin, OCp)     fused (flipped/transposed) weights
    # b_ref: (1, OCp)              bias (f32)
    # o_ref: (1, Fo, TT, OCp)      output tile (f32, lane-dense OCp)
    x = x_ref[0]                                   # (Fp, TT, KW*Cin)
    kc = x.shape[-1]
    # Fused contraction over (kw, cin); only KH matmuls remain.  Slices are
    # along the outer F axis only -> no sublane-offset relayouts.
    acc = jnp.dot(x[0:fo].reshape(fo * tt, kc), w_ref[0],
                  preferred_element_type=jnp.float32)
    for i in range(1, kh):                         # short static tap loop
        xi = x[i * d0:i * d0 + fo]
        acc = acc + jnp.dot(xi.reshape(fo * tt, kc), w_ref[i],
                            preferred_element_type=jnp.float32)
    acc = acc + b_ref[...]                         # (1, OCp) broadcast
    o_ref[0] = acc.reshape(fo, tt, -1).astype(o_ref.dtype)


# ------------------------------ JAX wrapper ---------------------------------

def _round_up(v, m):
    return ((v + m - 1) // m) * m


def _pair(v):
    return (v, v) if isinstance(v, int) else tuple(v)


def conv_transpose2d_pallas(x, weight, bias, *, stride, padding, output_padding,
                            dilation, compute_dtype=jnp.bfloat16,
                            max_time_tile=None,
                            tile_vmem_budget=16 * 1024 * 1024,
                            vmem_limit_bytes=40 * 1024 * 1024):
    """ConvTranspose2d forward (groups=1).

    x: (B, Cin, Hi, Wi) NCHW.  weight: (Cin, Cout, KH, KW) (PyTorch layout).
    bias: (Cout,).  Returns (B, Cout, Ho, Wo) float32.
    """
    B, Cin, Hi, Wi = x.shape
    _, Cout, KH, KW = weight.shape
    s0, s1 = stride
    p0, p1 = padding
    op0, op1 = output_padding
    d0, d1 = dilation

    Ho = (Hi - 1) * s0 - 2 * p0 + d0 * (KH - 1) + op0 + 1
    Wo = (Wi - 1) * s1 - 2 * p1 + d1 * (KW - 1) + op1 + 1

    # --- equivalent stride-1 forward conv: zero-insert (lhs dilation) + pad ---
    x = x.astype(compute_dtype)                    # bf16 in HBM: halves DMA bytes
    zero = jnp.zeros((), x.dtype)
    x_pad = lax.pad(x, zero, (
        (0, 0, 0), (0, 0, 0),
        (d0 * (KH - 1) - p0, d0 * (KH - 1) - p0 + op0, s0 - 1),
        (d1 * (KW - 1) - p1, d1 * (KW - 1) - p1 + op1, s1 - 1)))
    x_nhwc = jnp.transpose(x_pad, (0, 2, 3, 1))    # (B, Fp, Tp, Cin), channels on lanes
    Fp, Tp = x_nhwc.shape[1], x_nhwc.shape[2]
    Fo = Fp - d0 * (KH - 1)                        # == Ho
    To = Tp - d1 * (KW - 1)                        # == Wo

    # --- flipped / channel-transposed weights, time taps folded into K --------
    OCp = _round_up(Cout, 128)                     # lane-dense output / MXU N-dim
    KC = KW * Cin
    w_conv = jnp.transpose(weight, (2, 3, 0, 1))[::-1, ::-1]   # (KH, KW, Cin, Cout)
    w_fused = w_conv.reshape(KH, KC, Cout)
    w_fused = jnp.pad(w_fused, ((0, 0), (0, 0), (0, OCp - Cout))).astype(compute_dtype)
    b_pad = jnp.pad(bias.astype(jnp.float32), (0, OCp - Cout)).reshape(1, OCp)

    # --- time-tile size against a VMEM budget (double-buffered in/out + w) ----
    in_isz = jnp.dtype(compute_dtype).itemsize
    if max_time_tile is None:
        TT = _round_up(To, 8)
    else:
        TT = _round_up(min(max_time_tile, To), 8)
    w_bytes = 2 * KH * KC * OCp * in_isz
    while TT > 8:
        foot = 2 * (Fp * TT * KC * in_isz + Fo * TT * OCp * 4) + w_bytes
        if foot <= tile_vmem_budget:
            break
        TT -= 8
    NT = -(-To // TT)
    # TODO(synk): also tile the F (frequency) axis for very large Fp * Cin.

    # --- halo'd time tiles with the KW taps interleaved along channels --------
    t_need = NT * TT + (KW - 1) * d1
    if t_need > Tp:
        x_nhwc = jnp.pad(x_nhwc, ((0, 0), (0, 0), (0, t_need - Tp), (0, 0)))
    idx = (jnp.arange(NT)[:, None, None] * TT
           + jnp.arange(TT)[None, :, None]
           + jnp.arange(KW)[None, None, :] * d1)               # (NT, TT, KW)
    x_tiles = x_nhwc[:, :, idx, :]                              # (B, Fp, NT, TT, KW, Cin)
    x_tiles = jnp.transpose(x_tiles, (0, 2, 1, 3, 4, 5))
    x_tiles = x_tiles.reshape(B * NT, Fp, TT, KC)               # bf16 already

    kernel = functools.partial(_convtr_tile_kernel, kh=KH, d0=d0, fo=Fo, tt=TT)
    flops = 2 * B * NT * KH * (Fo * TT) * KC * OCp
    bytes_accessed = (x_tiles.size * in_isz + w_fused.size * in_isz
                      + b_pad.size * 4 + B * Fo * NT * TT * OCp * 4)

    out = pl.pallas_call(
        kernel,
        out_shape=jax.ShapeDtypeStruct((B, Fo, NT * TT, OCp), jnp.float32),
        grid_spec=pltpu.PrefetchScalarGridSpec(
            num_scalar_prefetch=0,
            grid=(B, NT),
            in_specs=[
                pl.BlockSpec((1, Fp, TT, KC), lambda b, n: (b * NT + n, 0, 0, 0)),
                pl.BlockSpec((KH, KC, OCp), lambda b, n: (0, 0, 0)),
                pl.BlockSpec((1, OCp), lambda b, n: (0, 0)),
            ],
            out_specs=pl.BlockSpec((1, Fo, TT, OCp), lambda b, n: (b, 0, n, 0)),
        ),
        compiler_params=pltpu.CompilerParams(
            dimension_semantics=("parallel", "parallel"),
            vmem_limit_bytes=vmem_limit_bytes),
        cost_estimate=pl.CostEstimate(flops=flops, transcendentals=0,
                                      bytes_accessed=bytes_accessed),
    )(x_tiles, w_fused, b_pad)

    out = out[:, :, :To, :Cout]                    # strip time / lane padding
    return jnp.transpose(out, (0, 3, 1, 2))        # NHWC -> NCHW


# ------------------------ NormConvTranspose2d (JAX) -------------------------

class NormConvTranspose2dPallas:
    """Port of NormConvTranspose2d with norm='none' (norm module == Identity)."""
    # TODO(synk): weight_norm / spectral_norm parametrizations and the
    # layer_norm / time_group_norm variants are not implemented; groups > 1 not
    # implemented.

    def __init__(self, in_channels, out_channels, kernel_size, stride=1,
                 padding=0, output_padding=0, groups=1, bias=True, dilation=1,
                 causal=False, norm="none", norm_kwargs=None,
                 key=jax.random.PRNGKey(0)):
        assert norm == "none", "only norm='none' is implemented"
        assert groups == 1, "groups > 1 not implemented"
        self.kernel_size = _pair(kernel_size)
        self.stride = _pair(stride)
        self.padding = _pair(padding)
        self.output_padding = _pair(output_padding)
        self.dilation = _pair(dilation)
        kw_key, kb_key = jax.random.split(key)
        kh, kw = self.kernel_size
        fan_in = out_channels * kh * kw            # PyTorch ConvTranspose fan-in
        bound = 1.0 / math.sqrt(fan_in)
        # weight in PyTorch ConvTranspose2d layout: (Cin, Cout, KH, KW)
        self.weight = jax.random.uniform(kw_key, (in_channels, out_channels, kh, kw),
                                         jnp.float32, -bound, bound)
        self.bias = (jax.random.uniform(kb_key, (out_channels,), jnp.float32,
                                        -bound, bound)
                     if bias else jnp.zeros((out_channels,), jnp.float32))

    def __call__(self, x, max_time_tile=None):
        assert x.ndim == 4
        y = conv_transpose2d_pallas(
            x, self.weight, self.bias,
            stride=self.stride, padding=self.padding,
            output_padding=self.output_padding, dilation=self.dilation,
            max_time_tile=max_time_tile)
        return y                                    # norm == Identity


# -------------------------- brute-force reference ---------------------------

def _reference_conv_transpose2d(x, w, b, stride, padding, output_padding, dilation):
    x = np.asarray(x, np.float64)
    w = np.asarray(w, np.float64)
    b = np.asarray(b, np.float64)
    B, Cin, Hi, Wi = x.shape
    _, Cout, KH, KW = w.shape
    s0, s1 = stride
    p0, p1 = padding
    op0, op1 = output_padding
    d0, d1 = dilation
    Ho = (Hi - 1) * s0 - 2 * p0 + d0 * (KH - 1) + op0 + 1
    Wo = (Wi - 1) * s1 - 2 * p1 + d1 * (KW - 1) + op1 + 1
    full = np.zeros((B, Cout,
                     (Hi - 1) * s0 + d0 * (KH - 1) + 1 + op0 + p0,
                     (Wi - 1) * s1 + d1 * (KW - 1) + 1 + op1 + p1))
    for kh in range(KH):
        for kw in range(KW):
            contrib = np.einsum('bihw,io->bohw', x, w[:, :, kh, kw])
            full[:, :, d0 * kh:d0 * kh + s0 * (Hi - 1) + 1:s0,
                       d1 * kw:d1 * kw + s1 * (Wi - 1) + 1:s1] += contrib
    return full[:, :, p0:p0 + Ho, p1:p1 + Wo] + b[None, :, None, None]


# --------------------------------- main --------------------------------------

if __name__ == "__main__":
    key = jax.random.PRNGKey(0)
    k1, k2, k3, k4 = jax.random.split(key, 4)

    # Test 1: typical 2x-upsampling transposed conv at small shapes.
    # max_time_tile=16 forces NT=2 time tiles to exercise the halo'd tiling path.
    B, Cin, Cout = 2, 4, 8
    x1 = jax.random.normal(k1, (B, Cin, 16, 16), jnp.float32)
    m1 = NormConvTranspose2dPallas(Cin, Cout, kernel_size=3, stride=2, padding=1,
                                   output_padding=1, bias=True, norm="none", key=k2)
    y1 = jax.block_until_ready(m1(x1, max_time_tile=16))
    ref1 = _reference_conv_transpose2d(x1, m1.weight, m1.bias, m1.stride,
                                       m1.padding, m1.output_padding, m1.dilation)
    assert y1.shape == (B, Cout, 32, 32), y1.shape
    np.testing.assert_allclose(np.asarray(y1), ref1, rtol=2e-2, atol=2e-2)

    # Test 2: asymmetric kernel / stride / padding + dilation, single time tile.
    x2 = jax.random.normal(k3, (B, Cin, 10, 9), jnp.float32)
    m2 = NormConvTranspose2dPallas(Cin, 6, kernel_size=(3, 2), stride=(1, 2),
                                   padding=(2, 1), output_padding=(0, 1),
                                   dilation=(2, 1), bias=True, norm="none", key=k4)
    y2 = jax.block_until_ready(m2(x2))
    ref2 = _reference_conv_transpose2d(x2, m2.weight, m2.bias, m2.stride,
                                       m2.padding, m2.output_padding, m2.dilation)
    assert y2.shape == (B, 6, 10, 17), y2.shape
    np.testing.assert_allclose(np.asarray(y2), ref2, rtol=2e-2, atol=2e-2)

    print("KERNEL_OK")
</pallas_src>

<mosaic_0001>
module attributes {stable_mosaic.version = 11 : i64} {
  func.func @_convtr_tile_kernel(%arg0: i32, %arg1: i32, %arg2: memref<1x34x16x12xbf16, #tpu.memory_space<vmem>>, %arg3: memref<3x12x128xbf16, #tpu.memory_space<vmem>>, %arg4: memref<1x128xf32, #tpu.memory_space<vmem>>, %arg5: memref<1x32x16x128xf32, #tpu.memory_space<vmem>>) attributes {dimension_semantics = [#tpu.dimension_semantics<parallel>, #tpu.dimension_semantics<parallel>], iteration_bounds = array<i64: 2, 2>, scalar_prefetch = 0 : i64, scratch_operands = 0 : i64, tpu.core_type = #tpu.core_type<tc>, window_params = [{transform_indices = @transform_0, window_bounds = array<i64: 1, 34, 16, 12>}, {pipeline_mode = #tpu.pipeline_mode<synchronous>, transform_indices = @transform_1, window_bounds = array<i64: 3, 12, 128>}, {pipeline_mode = #tpu.pipeline_mode<synchronous>, transform_indices = @transform_2, window_bounds = array<i64: 1, 128>}, {transform_indices = @transform_3, window_bounds = array<i64: 1, 32, 16, 128>}]} {
    %c0 = arith.constant 0 : index
    %c0_0 = arith.constant 0 : index
    %c0_1 = arith.constant 0 : index
    %c0_2 = arith.constant 0 : index
    %0 = vector.load %arg2[%c0, %c0_0, %c0_1, %c0_2] : memref<1x34x16x12xbf16, #tpu.memory_space<vmem>>, vector<1x34x16x12xbf16>
    %1 = vector.shape_cast %0 : vector<1x34x16x12xbf16> to vector<34x16x12xbf16>
    %2 = vector.extract_strided_slice %1 {offsets = [0, 0, 0], sizes = [32, 16, 12], strides = [1, 1, 1]} : vector<34x16x12xbf16> to vector<32x16x12xbf16>
    %3 = vector.shape_cast %2 : vector<32x16x12xbf16> to vector<512x12xbf16>
    %c0_3 = arith.constant 0 : index
    %c0_4 = arith.constant 0 : index
    %c0_5 = arith.constant 0 : index
    %4 = vector.load %arg3[%c0_3, %c0_4, %c0_5] : memref<3x12x128xbf16, #tpu.memory_space<vmem>>, vector<1x12x128xbf16>
    %5 = vector.shape_cast %4 : vector<1x12x128xbf16> to vector<12x128xbf16>
    %cst = arith.constant dense<0.000000e+00> : vector<512x128xf32>
    %6 = tpu.matmul %3, %5, %cst {dimension_numbers = #tpu.dot_dimension_numbers<[1], [0], [0], [1], [0, 0, 1, 1], [], []>} : vector<512x12xbf16>, vector<12x128xbf16>, vector<512x128xf32> -> vector<512x128xf32>
    %7 = vector.extract_strided_slice %1 {offsets = [1, 0, 0], sizes = [32, 16, 12], strides = [1, 1, 1]} : vector<34x16x12xbf16> to vector<32x16x12xbf16>
    %8 = vector.shape_cast %7 : vector<32x16x12xbf16> to vector<512x12xbf16>
    %c1 = arith.constant 1 : index
    %c0_6 = arith.constant 0 : index
    %c0_7 = arith.constant 0 : index
    %9 = vector.load %arg3[%c1, %c0_6, %c0_7] : memref<3x12x128xbf16, #tpu.memory_space<vmem>>, vector<1x12x128xbf16>
    %10 = vector.shape_cast %9 : vector<1x12x128xbf16> to vector<12x128xbf16>
    %cst_8 = arith.constant dense<0.000000e+00> : vector<512x128xf32>
    %11 = tpu.matmul %8, %10, %cst_8 {dimension_numbers = #tpu.dot_dimension_numbers<[1], [0], [0], [1], [0, 0, 1, 1], [], []>} : vector<512x12xbf16>, vector<12x128xbf16>, vector<512x128xf32> -> vector<512x128xf32>
    %12 = arith.addf %6, %11 : vector<512x128xf32>
    %13 = vector.extract_strided_slice %1 {offsets = [2, 0, 0], sizes = [32, 16, 12], strides = [1, 1, 1]} : vector<34x16x12xbf16> to vector<32x16x12xbf16>
    %14 = vector.shape_cast %13 : vector<32x16x12xbf16> to vector<512x12xbf16>
    %c2 = arith.constant 2 : index
    %c0_9 = arith.constant 0 : index
    %c0_10 = arith.constant 0 : index
    %15 = vector.load %arg3[%c2, %c0_9, %c0_10] : memref<3x12x128xbf16, #tpu.memory_space<vmem>>, vector<1x12x128xbf16>
    %16 = vector.shape_cast %15 : vector<1x12x128xbf16> to vector<12x128xbf16>
    %cst_11 = arith.constant dense<0.000000e+00> : vector<512x128xf32>
    %17 = tpu.matmul %14, %16, %cst_11 {dimension_numbers = #tpu.dot_dimension_numbers<[1], [0], [0], [1], [0, 0, 1, 1], [], []>} : vector<512x12xbf16>, vector<12x128xbf16>, vector<512x128xf32> -> vector<512x128xf32>
    %18 = arith.addf %12, %17 : vector<512x128xf32>
    %c0_12 = arith.constant 0 : index
    %c0_13 = arith.constant 0 : index
    %19 = vector.load %arg4[%c0_12, %c0_13] : memref<1x128xf32, #tpu.memory_space<vmem>>, vector<1x128xf32>
    %20 = vector.broadcast %19 : vector<1x128xf32> to vector<512x128xf32>
    %21 = arith.addf %18, %20 : vector<512x128xf32>
    %22 = vector.shape_cast %21 : vector<512x128xf32> to vector<32x16x128xf32>
    %c0_14 = arith.constant 0 : index
    %c0_15 = arith.constant 0 : index
    %c0_16 = arith.constant 0 : index
    %c0_17 = arith.constant 0 : index
    %23 = vector.load %arg5[%c0_14, %c0_15, %c0_16, %c0_17] : memref<1x32x16x128xf32, #tpu.memory_space<vmem>>, vector<1x32x16x128xf32>
    %24 = vector.shape_cast %23 : vector<1x32x16x128xf32> to vector<32x16x128xf32>
    %25 = vector.shape_cast %22 : vector<32x16x128xf32> to vector<1x32x16x128xf32>
    tpu.vector_store %arg5[%c0_14, %c0_15, %c0_16, %c0_17], %25 {strides = array<i32>} : memref<1x32x16x128xf32, #tpu.memory_space<vmem>>, vector<1x32x16x128xf32>,
    return
  }
  func.func @transform_0(%arg0: i32, %arg1: i32) -> (i32, i32, i32, i32) {
    %c2_i32 = arith.constant 2 : i32
    %0 = arith.muli %arg0, %c2_i32 : i32
    %1 = arith.addi %0, %arg1 : i32
    %c0_i32 = arith.constant 0 : i32
    %c0_i32_0 = arith.constant 0 : i32
    %c0_i32_1 = arith.constant 0 : i32
    %c0_i32_2 = arith.constant 0 : i32
    return %1, %c0_i32, %c0_i32_0, %c0_i32_1 : i32, i32, i32, i32
  }
  func.func @transform_1(%arg0: i32, %arg1: i32) -> (i32, i32, i32) {
    %c0_i32 = arith.constant 0 : i32
    %c0_i32_0 = arith.constant 0 : i32
    %c0_i32_1 = arith.constant 0 : i32
    %c0_i32_2 = arith.constant 0 : i32
    return %c0_i32, %c0_i32_0, %c0_i32_1 : i32, i32, i32
  }
  func.func @transform_2(%arg0: i32, %arg1: i32) -> (i32, i32) {
    %c0_i32 = arith.constant 0 : i32
    %c0_i32_0 = arith.constant 0 : i32
    %c0_i32_1 = arith.constant 0 : i32
    return %c0_i32, %c0_i32_0 : i32, i32
  }
  func.func @transform_3(%arg0: i32, %arg1: i32) -> (i32, i32, i32, i32) {
    %c0_i32 = arith.constant 0 : i32
    %c0_i32_0 = arith.constant 0 : i32
    %c0_i32_1 = arith.constant 0 : i32
    return %arg0, %c0_i32, %arg1, %c0_i32_0 : i32, i32, i32, i32
  }
}

</mosaic_0001>

<llo_original>
// kernel: tpu_custom_call.1
$region0: #{tpu_custom_call.1}
  #allocation0 [shape = 'u32[]', space=smem, size = 0x4, offset = 0x4, fixed_abs, tag = 'smem constant byte address 0x4 - core index']
  #allocation1 [shape = 'u32[144,128]{1,0:T(1,128)}', space=vmem, size = 0x12000, scoped, tag = 'internal scratch']
  #allocation4 [shape = 's32[]', space=sflag, size = 0x4, offset = 0, fixed_abs, tag = 'sflag constant byte address 0x0 - dummy sync flag']
  %s0 = inlined_call_operand.vmem [shape: bf16[4,34,16,12], index: 0, kind: input, shape index: {}]
  %s1 = inlined_call_operand.vmem [shape: bf16[3,12,128], index: 1, kind: input, shape index: {}]
  %s2 = inlined_call_operand.vmem [shape: f32[1,128], index: 2, kind: input, shape index: {}]
  %s3 = inlined_call_operand.hbm [shape: f32[2,32,32,128], index: 3, kind: output, shape index: {}]
  %s4 = sld [smem:[#allocation0]]
  $region45: #{tpu_custom_call.1} parent=0
    _
  %s6 = ssub.s32 1, %s4
  %s7 = scalar_select 0, %s6, %s4
  $region1: #{tpu_custom_call.1} parent=0
    #allocation2 [shape = 'u8[524288]{0}', space=vmem, size = 0x80000, scoped, tag = 'output window, operand 0']
    #allocation3 [shape = 's32[2]{0}', space=sflag, size = 0x8, scoped, tag = 'scoped memory for tpu_custom_call.1']
    %8 = vsyncpa [#allocation3], 0
    %s9 = scalar_lea.sflag [#allocation3], 1
    %10 = vsyncpa %s9, 0
    loop: start=0, step=1, limit=6
    $region2: #{tpu_custom_call.1} parent=1 // loop_pre_header
      _
    $region3: #{tpu_custom_call.1} parent=1 // loop_header
      %s12 = sphi 0, %s16
      %p13 = scmp.ge.s32.totalorder %s12, 6
      %s19 = sphi 0, %s31
      %s20 = sphi 0, %s27
      %s21 = sphi 0, %s19
      %s22 = sphi 0, %s20
      %s23 = sphi 0, %s21
      %s24 = sphi 0, %s22
      %s38 = sphi 0, %s40
      %s41 = sphi 0, %s38
      %s42 = sphi 0, %s41
      %s58 = sphi 0, %s42
      %s62 = sphi 0, %s62
      %s64 = sphi 0, %s62
      %s65 = sphi 0, %s64
      %s79 = sphi 0, %s65
      %s83 = sphi 0, %s83
      %s85 = sphi 0, %s83
      %s86 = sphi 0, %s85
      %s100 = sphi 0, %s86
      %s108 = sphi 0, %s110
      %s111 = sphi 0, %s108
      %s112 = sphi 0, %s111
      %s128 = sphi 0, %s112
    $region4: #{tpu_custom_call.1} parent=1 // loop_header_branch
      %15 = sbr.rel (%p13) target = $region8
    $region5: #{tpu_custom_call.1} parent=1 // loop_body
      %s17 = ssub.s32 %s12, 1
      %s18 = ssub.s32 %s12, 2
      %s25 = sadd.s32 1, %s20
      %p26 = scmp.ge.s32.totalorder %s25, 2
      %s27 = scalar_select %p26, 0, %s25
      %s28 = sadd.s32 1, %s19
      %s29 = scalar_select %p26, %s28, %s19
      %p30 = scmp.ge.s32.totalorder %s29, 2
      %s31 = scalar_select %p30, 0, %s29
      %s32 = smul.u32 %s19, 2
      %s33 = sadd.s32 %s32, %s20
      %s34 = smul.u32 %s31, 2
      %s35 = sadd.s32 %s34, %s27
      %s36 = ssub.s32 %s33, %s35
      %p37 = scmp.eq.s32.totalorder %s36, 0
      %s39 = sadd.s32 %s38, 1
      %s40 = scalar_select %p37, %s38, %s39
      %p43 = pneg %p37
      %p44 = scmp.eq.s32.totalorder %s12, 3
      %p45 = por %p43, %p44
      %p46 = scmp.ne.s32.totalorder %s38, %s41
      %p47 = scmp.eq.s32.totalorder %s12, 0
      %p48 = por %p46, %p47
      %p49 = scmp.ne.s32.totalorder %s38, %s41
      %p50 = scmp.eq.s32.totalorder %s17, 3
      %p51 = por %p49, %p50
      %p52 = scmp.ne.s32.totalorder %s41, %s42
      %p53 = scmp.eq.s32.totalorder %s17, 0
      %p54 = por %p52, %p53
      %p55 = scmp.ne.s32.totalorder %s41, %s42
      %p56 = scmp.eq.s32.totalorder %s18, 3
      %p57 = por %p55, %p56
      %p59 = scmp.ne.s32.totalorder %s42, %s58
      %p60 = scmp.eq.s32.totalorder %s18, 0
      %p61 = por %p59, %p60
      %s63 = sadd.s32 %s62, 1
      %p66 = scmp.eq.s32.totalorder %s12, 3
      %p67 = scmp.ne.s32.totalorder %s62, %s64
      %p68 = scmp.eq.s32.totalorder %s12, 0
      %p69 = por %p67, %p68
      %p70 = scmp.ne.s32.totalorder %s62, %s64
      %p71 = scmp.eq.s32.totalorder %s17, 3
      %p72 = por %p70, %p71
      %p73 = scmp.ne.s32.totalorder %s64, %s65
      %p74 = scmp.eq.s32.totalorder %s17, 0
      %p75 = por %p73, %p74
      %p76 = scmp.ne.s32.totalorder %s64, %s65
      %p77 = scmp.eq.s32.totalorder %s18, 3
      %p78 = por %p76, %p77
      %p80 = scmp.ne.s32.totalorder %s65, %s79
      %p81 = scmp.eq.s32.totalorder %s18, 0
      %p82 = por %p80, %p81
      %s84 = sadd.s32 %s83, 1
      %p87 = scmp.eq.s32.totalorder %s12, 3
      %p88 = scmp.ne.s32.totalorder %s83, %s85
      %p89 = scmp.eq.s32.totalorder %s12, 0
      %p90 = por %p88, %p89
      %p91 = scmp.ne.s32.totalorder %s83, %s85
      %p92 = scmp.eq.s32.totalorder %s17, 3
      %p93 = por %p91, %p92
      %p94 = scmp.ne.s32.totalorder %s85, %s86
      %p95 = scmp.eq.s32.totalorder %s17, 0
      %p96 = por %p94, %p95
      %p97 = scmp.ne.s32.totalorder %s85, %s86
      %p98 = scmp.eq.s32.totalorder %s18, 3
      %p99 = por %p97, %p98
      %p101 = scmp.ne.s32.totalorder %s86, %s100
      %p102 = scmp.eq.s32.totalorder %s18, 0
      %p103 = por %p101, %p102
      %s104 = ssub.s32 %s19, %s31
      %s105 = ssub.s32 %s20, %s27
      %s106 = sor.u32 %s104, %s105
      %p107 = scmp.eq.s32.totalorder %s106, 0
      %s109 = sadd.s32 %s108, 1
      %s110 = scalar_select %p107, %s108, %s109
      %p113 = pneg %p107
      %p114 = scmp.eq.s32.totalorder %s12, 3
      %p115 = por %p113, %p114
      %p116 = scmp.ne.s32.totalorder %s108, %s111
      %p117 = scmp.eq.s32.totalorder %s12, 0
      %p118 = por %p116, %p117
      %p119 = scmp.ne.s32.totalorder %s108, %s111
      %p120 = scmp.eq.s32.totalorder %s17, 3
      %p121 = por %p119, %p120
      %p122 = scmp.ne.s32.totalorder %s111, %s112
      %p123 = scmp.eq.s32.totalorder %s17, 0
      %p124 = por %p122, %p123
      %p125 = scmp.ne.s32.totalorder %s111, %s112
      %p126 = scmp.eq.s32.totalorder %s18, 3
      %p127 = por %p125, %p126
      %p129 = scmp.ne.s32.totalorder %s112, %s128
      %p130 = scmp.eq.s32.totalorder %s18, 0
      %p131 = por %p129, %p130
      %p132 = scmp.le.s32.totalorder 1, %s12
      %p133 = scmp.lt.s32.totalorder %s12, 5
      %p134 = pnand %p132, %p133
      %p135 = pneg %p134
      // Predicated region
      $region9: #{tpu_custom_call.1} parent=5 // pred_check
        _
      $region10: #{tpu_custom_call.1} parent=5 // pred_check_branch
        %137 = sbr.rel (%p134) target = $region12
      $region11: #{tpu_custom_call.1} parent=5 // pred_region
        %s138 = ssub.s32 %s12, 1
        // Predicated region
        $region13: #{tpu_custom_call.1} parent=11 // pred_check
          %p139 = pneg %p75
        $region14: #{tpu_custom_call.1} parent=11 // pred_check_branch
          %141 = sbr.rel (%p139) target = $region16
        $region15: #{tpu_custom_call.1} parent=11 // pred_region
          _
        $region16: #{tpu_custom_call.1} parent=11 // pred_fallthru
          _
        // Predicated region
        $region17: #{tpu_custom_call.1} parent=11 // pred_check
          %p142 = pneg %p96
        $region18: #{tpu_custom_call.1} parent=11 // pred_check_branch
          %144 = sbr.rel (%p142) target = $region20
        $region19: #{tpu_custom_call.1} parent=11 // pred_region
          _
        $region20: #{tpu_custom_call.1} parent=11 // pred_fallthru
          _
      $region12: #{tpu_custom_call.1} parent=5 // pred_fallthru
        _
      %p145 = scmp.lt.s32.totalorder %s12, 4
      // Predicated region
      $region21: #{tpu_custom_call.1} parent=5 // pred_check
        %p146 = pneg %p145
      $region22: #{tpu_custom_call.1} parent=5 // pred_check_branch
        %148 = sbr.rel (%p146) target = $region24
      $region23: #{tpu_custom_call.1} parent=5 // pred_region
        // Predicated region
        $region25: #{tpu_custom_call.1} parent=23 // pred_check
          %p149 = pneg %p48
        $region26: #{tpu_custom_call.1} parent=23 // pred_check_branch
          %151 = sbr.rel (%p149) target = $region28
        $region27: #{tpu_custom_call.1} parent=23 // pred_region
          %s152 = smul.u32 %s19, 2
          %s153 = sadd.s32 %s152, %s20
          %p154 = scmp.lt.s32.totalorder %s153, 3
          %s155 = scalar_select %p154, %s153, 3
          %s156 = smul.addr %s155, 68
          %s157 = smul.addr %s156, 4
          %s158 = scalar_lea.vmem %s0, %s157
          %s159 = smul.u32 %s19, 2
          %s160 = sadd.s32 %s159, %s20
        $region28: #{tpu_custom_call.1} parent=23 // pred_fallthru
          _
      $region24: #{tpu_custom_call.1} parent=5 // pred_fallthru
        _
      %p161 = scmp.le.s32.totalorder 1, %s12
      %p162 = scmp.lt.s32.totalorder %s12, 5
      %p163 = pnand %p161, %p162
      %p164 = pneg %p163
      // Predicated region
      $region29: #{tpu_custom_call.1} parent=5 // pred_check
        _
      $region30: #{tpu_custom_call.1} parent=5 // pred_check_branch
        %166 = sbr.rel (%p163) target = $region32
      $region31: #{tpu_custom_call.1} parent=5 // pred_region
        %s167 = ssub.s32 %s12, 1
        %s168 = smul.u32 %s21, 2
        %s169 = sadd.s32 %s168, %s22
        %p170 = scmp.lt.s32.totalorder %s169, 3
        %s171 = scalar_select %p170, %s169, 3
        %s172 = smul.addr %s171, 68
        %s173 = smul.addr %s172, 4
        %s174 = scalar_lea.vmem %s0, %s173
        %p175 = pneg %p54
        %p176 = pneg %p51
        %p177 = pneg %p75
        %p178 = pneg %p72
        %p179 = pneg %p96
        %p180 = pneg %p93
        %p181 = pneg %p124
        %p182 = pneg %p121
        %s183 = sand.u32 %s111, 1
        %s184 = scalar_lea.sflag [#allocation3], %s183
        %s185 = sand.u32 %s111, 1
        %s186 = smul.addr %s185, 512
        %s187 = scalar_lea.vmem [#allocation2], %s186
        %s188 = smul.u32 %s21, 2
        %s189 = sadd.s32 %s188, %s22
        %p190 = scmp.lt.s32.totalorder %s189, 3
        %s191 = scalar_select %p190, %s189, 3
        %s192 = smul.addr %s191, 68
        %s193 = smul.addr %s192, 4
        %s194 = scalar_lea.vmem %s0, %s193
        %s195 = smul.u32 %s21, 2
        %s196 = sadd.s32 %s195, %s22
        %s197 = smul.u32 2, %s22
        %v199 = vld [vmem:[%s194] sm:$0xf]
        %v200 = vld [vmem:[%s194 + $0x4] sm:$0xf]
        %v201 = vld [vmem:[%s194 + $0x8] sm:$0xf]
        %v202 = vld [vmem:[%s194 + $0xc] sm:$0xf]
        %v203 = vld [vmem:[%s194 + $0x10] sm:$0xf]
        %v204 = vld [vmem:[%s194 + $0x14] sm:$0xf]
        %v205 = vld [vmem:[%s194 + $0x18] sm:$0xf]
        %v206 = vld [vmem:[%s194 + $0x1c] sm:$0xf]
        %v207 = vld [vmem:[%s194 + $0x20] sm:$0xf]
        %v208 = vld [vmem:[%s194 + $0x24] sm:$0xf]
        %v209 = vld [vmem:[%s194 + $0x28] sm:$0xf]
        %v210 = vld [vmem:[%s194 + $0x2c] sm:$0xf]
        %v211 = vld [vmem:[%s194 + $0x30] sm:$0xf]
        %v212 = vld [vmem:[%s194 + $0x34] sm:$0xf]
        %v213 = vld [vmem:[%s194 + $0x38] sm:$0xf]
        %v214 = vld [vmem:[%s194 + $0x3c] sm:$0xf]
        %v215 = vld [vmem:[%s194 + $0x40] sm:$0xf]
        %v216 = vld [vmem:[%s194 + $0x44] sm:$0xf]
        %v217 = vld [vmem:[%s194 + $0x48] sm:$0xf]
        %v218 = vld [vmem:[%s194 + $0x4c] sm:$0xf]
        %v219 = vld [vmem:[%s194 + $0x50] sm:$0xf]
        %v220 = vld [vmem:[%s194 + $0x54] sm:$0xf]
        %v221 = vld [vmem:[%s194 + $0x58] sm:$0xf]
        %v222 = vld [vmem:[%s194 + $0x5c] sm:$0xf]
        %v223 = vld [vmem:[%s194 + $0x60] sm:$0xf]
        %v224 = vld [vmem:[%s194 + $0x64] sm:$0xf]
        %v225 = vld [vmem:[%s194 + $0x68] sm:$0xf]
        %v226 = vld [vmem:[%s194 + $0x6c] sm:$0xf]
        %v227 = vld [vmem:[%s194 + $0x70] sm:$0xf]
        %v228 = vld [vmem:[%s194 + $0x74] sm:$0xf]
        %v229 = vld [vmem:[%s194 + $0x78] sm:$0xf]
        %v230 = vld [vmem:[%s194 + $0x7c] sm:$0xf]
        %v231 = vld [vmem:[%s194 + $0x80] sm:$0xf]
        %v232 = vld [vmem:[%s194 + $0x84] sm:$0xf]
        %v233 = vld [vmem:[%s194 + $0x88] sm:$0xf]
        %v234 = vld [vmem:[%s194 + $0x8c] sm:$0xf]
        %v235 = vld [vmem:[%s194 + $0x90] sm:$0xf]
        %v236 = vld [vmem:[%s194 + $0x94] sm:$0xf]
        %v237 = vld [vmem:[%s194 + $0x98] sm:$0xf]
        %v238 = vld [vmem:[%s194 + $0x9c] sm:$0xf]
        %v239 = vld [vmem:[%s194 + $0xa0] sm:$0xf]
        %v240 = vld [vmem:[%s194 + $0xa4] sm:$0xf]
        %v241 = vld [vmem:[%s194 + $0xa8] sm:$0xf]
        %v242 = vld [vmem:[%s194 + $0xac] sm:$0xf]
        %v243 = vld [vmem:[%s194 + $0xb0] sm:$0xf]
        %v244 = vld [vmem:[%s194 + $0xb4] sm:$0xf]
        %v245 = vld [vmem:[%s194 + $0xb8] sm:$0xf]
        %v246 = vld [vmem:[%s194 + $0xbc] sm:$0xf]
        %v247 = vld [vmem:[%s194 + $0xc0] sm:$0xf]
        %v248 = vld [vmem:[%s194 + $0xc4] sm:$0xf]
        %v249 = vld [vmem:[%s194 + $0xc8] sm:$0xf]
        %v250 = vld [vmem:[%s194 + $0xcc] sm:$0xf]
        %v251 = vld [vmem:[%s194 + $0xd0] sm:$0xf]
        %v252 = vld [vmem:[%s194 + $0xd4] sm:$0xf]
        %v253 = vld [vmem:[%s194 + $0xd8] sm:$0xf]
        %v254 = vld [vmem:[%s194 + $0xdc] sm:$0xf]
        %v255 = vld [vmem:[%s194 + $0xe0] sm:$0xf]
        %v256 = vld [vmem:[%s194 + $0xe4] sm:$0xf]
        %v257 = vld [vmem:[%s194 + $0xe8] sm:$0xf]
        %v258 = vld [vmem:[%s194 + $0xec] sm:$0xf]
        %v259 = vld [vmem:[%s194 + $0xf0] sm:$0xf]
        %v260 = vld [vmem:[%s194 + $0xf4] sm:$0xf]
        %v261 = vld [vmem:[%s194 + $0xf8] sm:$0xf]
        %v262 = vld [vmem:[%s194 + $0xfc] sm:$0xf]
        %v263 = vld [vmem:[%s194 + $0x100] sm:$0xf]
        %v264 = vld [vmem:[%s194 + $0x104] sm:$0xf]
        %v265 = vld [vmem:[%s194 + $0x108] sm:$0xf]
        %v266 = vld [vmem:[%s194 + $0x10c] sm:$0xf]
        %v267 = vld [vmem:[%s1] sm:$0xf]
        %v268 = vld [vmem:[%s1 + $0x4] sm:$0x3]
        %s269 = scalar_lea.vmem %s1, 8
        %v270 = vld [vmem:[%s269] sm:$0xf]
        %v271 = vld [vmem:[%s269 + $0x4] sm:$0x3]
        %v336 = vunpack.c.l.b16 %v201
        %v337 = vunpack.c.l.b16 %v202
        %v338 = vunpack.c.l.b16 %v203
        %v339 = vunpack.c.l.b16 %v204
        %v340 = vunpack.c.l.b16 %v205
        %v341 = vunpack.c.l.b16 %v206
        %v342 = vunpack.c.l.b16 %v207
        %v343 = vunpack.c.l.b16 %v208
        %v344 = vunpack.c.l.b16 %v209
        %v345 = vunpack.c.l.b16 %v210
        %v346 = vunpack.c.l.b16 %v211
        %v347 = vunpack.c.l.b16 %v212
        %v348 = vunpack.c.l.b16 %v213
        %v349 = vunpack.c.l.b16 %v214
        %v350 = vunpack.c.l.b16 %v215
        %v351 = vunpack.c.l.b16 %v216
        %v352 = vunpack.c.l.b16 %v217
        %v353 = vunpack.c.l.b16 %v218
        %v354 = vunpack.c.l.b16 %v219
        %v355 = vunpack.c.l.b16 %v220
        %v356 = vunpack.c.l.b16 %v221
        %v357 = vunpack.c.l.b16 %v222
        %v358 = vunpack.c.l.b16 %v223
        %v359 = vunpack.c.l.b16 %v224
        %v360 = vunpack.c.l.b16 %v225
        %v361 = vunpack.c.l.b16 %v226
        %v362 = vunpack.c.l.b16 %v227
        %v363 = vunpack.c.l.b16 %v228
        %v364 = vunpack.c.l.b16 %v229
        %v365 = vunpack.c.l.b16 %v230
        %v366 = vunpack.c.l.b16 %v231
        %v367 = vunpack.c.l.b16 %v232
        %v368 = vunpack.c.l.b16 %v233
        %v369 = vunpack.c.l.b16 %v234
        %v370 = vunpack.c.l.b16 %v235
        %v371 = vunpack.c.l.b16 %v236
        %v372 = vunpack.c.l.b16 %v237
        %v373 = vunpack.c.l.b16 %v238
        %v374 = vunpack.c.l.b16 %v239
        %v375 = vunpack.c.l.b16 %v240
        %v376 = vunpack.c.l.b16 %v241
        %v377 = vunpack.c.l.b16 %v242
        %v378 = vunpack.c.l.b16 %v243
        %v379 = vunpack.c.l.b16 %v244
        %v380 = vunpack.c.l.b16 %v245
        %v381 = vunpack.c.l.b16 %v246
        %v382 = vunpack.c.l.b16 %v247
        %v383 = vunpack.c.l.b16 %v248
        %v384 = vunpack.c.l.b16 %v249
        %v385 = vunpack.c.l.b16 %v250
        %v386 = vunpack.c.l.b16 %v251
        %v387 = vunpack.c.l.b16 %v252
        %v388 = vunpack.c.l.b16 %v253
        %v389 = vunpack.c.l.b16 %v254
        %v390 = vunpack.c.l.b16 %v255
        %v391 = vunpack.c.l.b16 %v256
        %v392 = vunpack.c.l.b16 %v257
        %v393 = vunpack.c.l.b16 %v258
        %v394 = vunpack.c.l.b16 %v259
        %v395 = vunpack.c.l.b16 %v260
        %v396 = vunpack.c.l.b16 %v261
        %v397 = vunpack.c.l.b16 %v262
        %v398 = vunpack.c.l.b16 %v263
        %v399 = vunpack.c.l.b16 %v264
        %v400 = vpack.c.b16 %v337, %v336
        %v401 = vpack.c.b16 %v339, %v338
        %v402 = vpack.c.b16 %v341, %v340
        %v403 = vpack.c.b16 %v343, %v342
        %v404 = vpack.c.b16 %v345, %v344
        %v405 = vpack.c.b16 %v347, %v346
        %v406 = vpack.c.b16 %v349, %v348
        %v407 = vpack.c.b16 %v351, %v350
        %v408 = vpack.c.b16 %v353, %v352
        %v409 = vpack.c.b16 %v355, %v354
        %v410 = vpack.c.b16 %v357, %v356
        %v411 = vpack.c.b16 %v359, %v358
        %v412 = vpack.c.b16 %v361, %v360
        %v413 = vpack.c.b16 %v363, %v362
        %v414 = vpack.c.b16 %v365, %v364
        %v415 = vpack.c.b16 %v367, %v366
        %v416 = vpack.c.b16 %v369, %v368
        %v417 = vpack.c.b16 %v371, %v370
        %v418 = vpack.c.b16 %v373, %v372
        %v419 = vpack.c.b16 %v375, %v374
        %v420 = vpack.c.b16 %v377, %v376
        %v421 = vpack.c.b16 %v379, %v378
        %v422 = vpack.c.b16 %v381, %v380
        %v423 = vpack.c.b16 %v383, %v382
        %v424 = vpack.c.b16 %v385, %v384
        %v425 = vpack.c.b16 %v387, %v386
        %v426 = vpack.c.b16 %v389, %v388
        %v427 = vpack.c.b16 %v391, %v390
        %v428 = vpack.c.b16 %v393, %v392
        %v429 = vpack.c.b16 %v395, %v394
        %v430 = vpack.c.b16 %v397, %v396
        %v431 = vpack.c.b16 %v399, %v398
        %v434 = vunpack.c.l.b16 %v270
        %v435 = vunpack.c.l.b16 %v271
        %v436 = vpack.c.b16 %v435, %v434
        %vm437 = vcmask 97280
        %v439 = vsel %vm437, %v400, 0
        %v442 = vsel %vm437, %v401, 0
        %v445 = vsel %vm437, %v402, 0
        %v448 = vsel %vm437, %v403, 0
        %v451 = vsel %vm437, %v404, 0
        %v454 = vsel %vm437, %v405, 0
        %v457 = vsel %vm437, %v406, 0
        %v460 = vsel %vm437, %v407, 0
        %v463 = vsel %vm437, %v408, 0
        %v466 = vsel %vm437, %v409, 0
        %v469 = vsel %vm437, %v410, 0
        %v472 = vsel %vm437, %v411, 0
        %v475 = vsel %vm437, %v412, 0
        %v478 = vsel %vm437, %v413, 0
        %v481 = vsel %vm437, %v414, 0
        %v484 = vsel %vm437, %v415, 0
        %v487 = vsel %vm437, %v416, 0
        %v490 = vsel %vm437, %v417, 0
        %v493 = vsel %vm437, %v418, 0
        %v496 = vsel %vm437, %v419, 0
        %v499 = vsel %vm437, %v420, 0
        %v502 = vsel %vm437, %v421, 0
        %v505 = vsel %vm437, %v422, 0
        %v508 = vsel %vm437, %v423, 0
        %v511 = vsel %vm437, %v424, 0
        %v514 = vsel %vm437, %v425, 0
        %v517 = vsel %vm437, %v426, 0
        %v520 = vsel %vm437, %v427, 0
        %v523 = vsel %vm437, %v428, 0
        %v526 = vsel %vm437, %v429, 0
        %v529 = vsel %vm437, %v430, 0
        %v532 = vsel %vm437, %v431, 0
        %vm534 = vcmask 1045504
        %v536 = vsel %vm534, %v436, 0
        %538 = vmatprep.subr.bf16.mxu0 0
        %539 = vmatpush1.bf16.msra.mxu0 0
        %540 = vmatprep.subr.bf16.mxu0 0
        %541 = vmatpush1.bf16.msra.mxu0 0
        %542 = vmatprep.subr.bf16.mxu0 0
        %543 = vmatpush1.bf16.msra.mxu0 0
        %544 = vmatprep.subr.bf16.mxu0 0
        %545 = vmatpush1.bf16.msra.mxu0 0
        %546 = vmatprep.subr.bf16.mxu0 0
        %547 = vmatpush1.bf16.msra.mxu0 0
        %548 = vmatprep.subr.bf16.mxu0 0
        %549 = vmatpush1.bf16.msra.mxu0 0
        %550 = vmatprep.subr.bf16.mxu0 0
        %551 = vmatpush1.bf16.msra.mxu0 0
        %552 = vmatprep.subr.bf16.mxu0 0
        %553 = vmatpush1.bf16.msra.mxu0 %v536
        %554 = vmatprep.subr.bf16.mxu0 0
        %555 = vmatpush2.bf16.msra.mxu0 0
        %556 = vmatprep.subr.bf16.mxu0 0
        %557 = vmatpush2.bf16.msra.mxu0 0
        %558 = vmatprep.subr.bf16.mxu0 0
        %559 = vmatpush2.bf16.msra.mxu0 0
        %560 = vmatprep.subr.bf16.mxu0 0
        %561 = vmatpush2.bf16.msra.mxu0 0
        %562 = vmatprep.subr.bf16.mxu0 0
        %563 = vmatpush2.bf16.msra.mxu0 0
        %564 = vmatprep.subr.bf16.mxu0 0
        %565 = vmatpush2.bf16.msra.mxu0 0
        %566 = vmatprep.subr.bf16.mxu0 0
        %567 = vmatpush2.bf16.msra.mxu0 0
        %568 = vmatprep.subr.bf16.mxu0 0
        %569 = vmatpush2.bf16.msra.mxu0 0
        %570 = vmatprep.mubr.bf16.mxu0 0
        %571 = vmatmul.mubr.bf16.gmra.mxu0 %v439
        %v572 = vpop.f32.mrf.mxu0
        %v573 = vadd.f32 0.0, %v572
        %v574 = vpop.f32.mrf.mxu0
        %v575 = vpop.f32.mrf.mxu0
        %v576 = vadd.f32 0.0, %v575
        %v577 = vpop.f32.mrf.mxu0
        %578 = vmatprep.mubr.bf16.mxu0 0
        %579 = vmatmul.mubr.bf16.gmra.mxu0 %v442
        %v580 = vpop.f32.mrf.mxu0
        %v581 = vadd.f32 0.0, %v580
        %v582 = vpop.f32.mrf.mxu0
        %v583 = vpop.f32.mrf.mxu0
        %v584 = vadd.f32 0.0, %v583
        %v585 = vpop.f32.mrf.mxu0
        %586 = vmatprep.mubr.bf16.mxu0 0
        %587 = vmatmul.mubr.bf16.gmra.mxu0 %v445
        %v588 = vpop.f32.mrf.mxu0
        %v589 = vadd.f32 0.0, %v588
        %v590 = vpop.f32.mrf.mxu0
        %v591 = vpop.f32.mrf.mxu0
        %v592 = vadd.f32 0.0, %v591
        %v593 = vpop.f32.mrf.mxu0
        %594 = vmatprep.mubr.bf16.mxu0 0
        %595 = vmatmul.mubr.bf16.gmra.mxu0 %v448
        %v596 = vpop.f32.mrf.mxu0
        %v597 = vadd.f32 0.0, %v596
        %v598 = vpop.f32.mrf.mxu0
        %v599 = vpop.f32.mrf.mxu0
        %v600 = vadd.f32 0.0, %v599
        %v601 = vpop.f32.mrf.mxu0
        %602 = vmatprep.mubr.bf16.mxu0 0
        %603 = vmatmul.mubr.bf16.gmra.mxu0 %v451
        %v604 = vpop.f32.mrf.mxu0
        %v605 = vadd.f32 0.0, %v604
        %v606 = vpop.f32.mrf.mxu0
        %v607 = vpop.f32.mrf.mxu0
        %v608 = vadd.f32 0.0, %v607
        %v609 = vpop.f32.mrf.mxu0
        %610 = vmatprep.mubr.bf16.mxu0 0
        %611 = vmatmul.mubr.bf16.gmra.mxu0 %v454
        %v612 = vpop.f32.mrf.mxu0
        %v613 = vadd.f32 0.0, %v612
        %v614 = vpop.f32.mrf.mxu0
        %v615 = vpop.f32.mrf.mxu0
        %v616 = vadd.f32 0.0, %v615
        %v617 = vpop.f32.mrf.mxu0
        %618 = vmatprep.mubr.bf16.mxu0 0
        %619 = vmatmul.mubr.bf16.gmra.mxu0 %v457
        %v620 = vpop.f32.mrf.mxu0
        %v621 = vadd.f32 0.0, %v620
        %v622 = vpop.f32.mrf.mxu0
        %v623 = vpop.f32.mrf.mxu0
        %v624 = vadd.f32 0.0, %v623
        %v625 = vpop.f32.mrf.mxu0
        %626 = vmatprep.mubr.bf16.mxu0 0
        %627 = vmatmul.mubr.bf16.gmra.mxu0 %v460
        %v628 = vpop.f32.mrf.mxu0
        %v629 = vadd.f32 0.0, %v628
        %v630 = vpop.f32.mrf.mxu0
        %v631 = vpop.f32.mrf.mxu0
        %v632 = vadd.f32 0.0, %v631
        %v633 = vpop.f32.mrf.mxu0
        %634 = vmatprep.mubr.bf16.mxu0 0
        %635 = vmatmul.mubr.bf16.gmra.mxu0 %v463
        %v636 = vpop.f32.mrf.mxu0
        %v637 = vadd.f32 0.0, %v636
        %v638 = vpop.f32.mrf.mxu0
        %v639 = vpop.f32.mrf.mxu0
        %v640 = vadd.f32 0.0, %v639
        %v641 = vpop.f32.mrf.mxu0
        %642 = vmatprep.mubr.bf16.mxu0 0
        %643 = vmatmul.mubr.bf16.gmra.mxu0 %v466
        %v644 = vpop.f32.mrf.mxu0
        %v645 = vadd.f32 0.0, %v644
        %v646 = vpop.f32.mrf.mxu0
        %v647 = vpop.f32.mrf.mxu0
        %v648 = vadd.f32 0.0, %v647
        %v649 = vpop.f32.mrf.mxu0
        %650 = vmatprep.mubr.bf16.mxu0 0
        %651 = vmatmul.mubr.bf16.gmra.mxu0 %v469
        %v652 = vpop.f32.mrf.mxu0
        %v653 = vadd.f32 0.0, %v652
        %v654 = vpop.f32.mrf.mxu0
        %v655 = vpop.f32.mrf.mxu0
        %v656 = vadd.f32 0.0, %v655
        %v657 = vpop.f32.mrf.mxu0
        %658 = vmatprep.mubr.bf16.mxu0 0
        %659 = vmatmul.mubr.bf16.gmra.mxu0 %v472
        %v660 = vpop.f32.mrf.mxu0
        %v661 = vadd.f32 0.0, %v660
        %v662 = vpop.f32.mrf.mxu0
        %v663 = vpop.f32.mrf.mxu0
        %v664 = vadd.f32 0.0, %v663
        %v665 = vpop.f32.mrf.mxu0
        %666 = vmatprep.mubr.bf16.mxu0 0
        %667 = vmatmul.mubr.bf16.gmra.mxu0 %v475
        %v668 = vpop.f32.mrf.mxu0
        %v669 = vadd.f32 0.0, %v668
        %v670 = vpop.f32.mrf.mxu0
        %v671 = vpop.f32.mrf.mxu0
        %v672 = vadd.f32 0.0, %v671
        %v673 = vpop.f32.mrf.mxu0
        %674 = vmatprep.mubr.bf16.mxu0 0
        %675 = vmatmul.mubr.bf16.gmra.mxu0 %v478
        %v676 = vpop.f32.mrf.mxu0
        %v677 = vadd.f32 0.0, %v676
        %v678 = vpop.f32.mrf.mxu0
        %v679 = vpop.f32.mrf.mxu0
        %v680 = vadd.f32 0.0, %v679
        %v681 = vpop.f32.mrf.mxu0
        %682 = vmatprep.mubr.bf16.mxu0 0
        %683 = vmatmul.mubr.bf16.gmra.mxu0 %v481
        %v684 = vpop.f32.mrf.mxu0
        %v685 = vadd.f32 0.0, %v684
        %v686 = vpop.f32.mrf.mxu0
        %v687 = vpop.f32.mrf.mxu0
        %v688 = vadd.f32 0.0, %v687
        %v689 = vpop.f32.mrf.mxu0
        %690 = vmatprep.mubr.bf16.mxu0 0
        %691 = vmatmul.mubr.bf16.gmra.mxu0 %v484
        %v692 = vpop.f32.mrf.mxu0
        %v693 = vadd.f32 0.0, %v692
        %v694 = vpop.f32.mrf.mxu0
        %v695 = vpop.f32.mrf.mxu0
        %v696 = vadd.f32 0.0, %v695
        %v697 = vpop.f32.mrf.mxu0
        %698 = vmatprep.mubr.bf16.mxu0 0
        %699 = vmatmul.mubr.bf16.gmra.mxu0 %v487
        %v700 = vpop.f32.mrf.mxu0
        %v701 = vadd.f32 0.0, %v700
        %v702 = vpop.f32.mrf.mxu0
        %v703 = vpop.f32.mrf.mxu0
        %v704 = vadd.f32 0.0, %v703
        %v705 = vpop.f32.mrf.mxu0
        %706 = vmatprep.mubr.bf16.mxu0 0
        %707 = vmatmul.mubr.bf16.gmra.mxu0 %v490
        %v708 = vpop.f32.mrf.mxu0
        %v709 = vadd.f32 0.0, %v708
        %v710 = vpop.f32.mrf.mxu0
        %v711 = vpop.f32.mrf.mxu0
        %v712 = vadd.f32 0.0, %v711
        %v713 = vpop.f32.mrf.mxu0
        %714 = vmatprep.mubr.bf16.mxu0 0
        %715 = vmatmul.mubr.bf16.gmra.mxu0 %v493
        %v716 = vpop.f32.mrf.mxu0
        %v717 = vadd.f32 0.0, %v716
        %v718 = vpop.f32.mrf.mxu0
        %v719 = vpop.f32.mrf.mxu0
        %v720 = vadd.f32 0.0, %v719
        %v721 = vpop.f32.mrf.mxu0
        %722 = vmatprep.mubr.bf16.mxu0 0
        %723 = vmatmul.mubr.bf16.gmra.mxu0 %v496
        %v724 = vpop.f32.mrf.mxu0
        %v725 = vadd.f32 0.0, %v724
        %v726 = vpop.f32.mrf.mxu0
        %v727 = vpop.f32.mrf.mxu0
        %v728 = vadd.f32 0.0, %v727
        %v729 = vpop.f32.mrf.mxu0
        %730 = vmatprep.mubr.bf16.mxu0 0
        %731 = vmatmul.mubr.bf16.gmra.mxu0 %v499
        %v732 = vpop.f32.mrf.mxu0
        %v733 = vadd.f32 0.0, %v732
        %v734 = vpop.f32.mrf.mxu0
        %v735 = vpop.f32.mrf.mxu0
        %v736 = vadd.f32 0.0, %v735
        %v737 = vpop.f32.mrf.mxu0
        %738 = vmatprep.mubr.bf16.mxu0 0
        %739 = vmatmul.mubr.bf16.gmra.mxu0 %v502
        %v740 = vpop.f32.mrf.mxu0
        %v741 = vadd.f32 0.0, %v740
        %v742 = vpop.f32.mrf.mxu0
        %v743 = vpop.f32.mrf.mxu0
        %v744 = vadd.f32 0.0, %v743
        %v745 = vpop.f32.mrf.mxu0
        %746 = vmatprep.mubr.bf16.mxu0 0
        %747 = vmatmul.mubr.bf16.gmra.mxu0 %v505
        %v748 = vpop.f32.mrf.mxu0
        %v749 = vadd.f32 0.0, %v748
        %v750 = vpop.f32.mrf.mxu0
        %v751 = vpop.f32.mrf.mxu0
        %v752 = vadd.f32 0.0, %v751
        %v753 = vpop.f32.mrf.mxu0
        %754 = vmatprep.mubr.bf16.mxu0 0
        %755 = vmatmul.mubr.bf16.gmra.mxu0 %v508
        %v756 = vpop.f32.mrf.mxu0
        %v757 = vadd.f32 0.0, %v756
        %v758 = vpop.f32.mrf.mxu0
        %v759 = vpop.f32.mrf.mxu0
        %v760 = vadd.f32 0.0, %v759
        %v761 = vpop.f32.mrf.mxu0
        %762 = vmatprep.mubr.bf16.mxu0 0
        %763 = vmatmul.mubr.bf16.gmra.mxu0 %v511
        %v764 = vpop.f32.mrf.mxu0
        %v765 = vadd.f32 0.0, %v764
        %v766 = vpop.f32.mrf.mxu0
        %v767 = vpop.f32.mrf.mxu0
        %v768 = vadd.f32 0.0, %v767
        %v769 = vpop.f32.mrf.mxu0
        %770 = vmatprep.mubr.bf16.mxu0 0
        %771 = vmatmul.mubr.bf16.gmra.mxu0 %v514
        %v772 = vpop.f32.mrf.mxu0
        %v773 = vadd.f32 0.0, %v772
        %v774 = vpop.f32.mrf.mxu0
        %v775 = vpop.f32.mrf.mxu0
        %v776 = vadd.f32 0.0, %v775
        %v777 = vpop.f32.mrf.mxu0
        %778 = vmatprep.mubr.bf16.mxu0 0
        %779 = vmatmul.mubr.bf16.gmra.mxu0 %v517
        %v780 = vpop.f32.mrf.mxu0
        %v781 = vadd.f32 0.0, %v780
        %v782 = vpop.f32.mrf.mxu0
        %v783 = vpop.f32.mrf.mxu0
        %v784 = vadd.f32 0.0, %v783
        %v785 = vpop.f32.mrf.mxu0
        %786 = vmatprep.mubr.bf16.mxu0 0
        %787 = vmatmul.mubr.bf16.gmra.mxu0 %v520
        %v788 = vpop.f32.mrf.mxu0
        %v789 = vadd.f32 0.0, %v788
        %v790 = vpop.f32.mrf.mxu0
        %v791 = vpop.f32.mrf.mxu0
        %v792 = vadd.f32 0.0, %v791
        %v793 = vpop.f32.mrf.mxu0
        %794 = vmatprep.mubr.bf16.mxu0 0
        %795 = vmatmul.mubr.bf16.gmra.mxu0 %v523
        %v796 = vpop.f32.mrf.mxu0
        %v797 = vadd.f32 0.0, %v796
        %v798 = vpop.f32.mrf.mxu0
        %v799 = vpop.f32.mrf.mxu0
        %v800 = vadd.f32 0.0, %v799
        %v801 = vpop.f32.mrf.mxu0
        %802 = vmatprep.mubr.bf16.mxu0 0
        %803 = vmatmul.mubr.bf16.gmra.mxu0 %v526
        %v804 = vpop.f32.mrf.mxu0
        %v805 = vadd.f32 0.0, %v804
        %v806 = vpop.f32.mrf.mxu0
        %v807 = vpop.f32.mrf.mxu0
        %v808 = vadd.f32 0.0, %v807
        %v809 = vpop.f32.mrf.mxu0
        %810 = vmatprep.mubr.bf16.mxu0 0
        %811 = vmatmul.mubr.bf16.gmra.mxu0 %v529
        %v812 = vpop.f32.mrf.mxu0
        %v813 = vadd.f32 0.0, %v812
        %v814 = vpop.f32.mrf.mxu0
        %v815 = vpop.f32.mrf.mxu0
        %v816 = vadd.f32 0.0, %v815
        %v817 = vpop.f32.mrf.mxu0
        %818 = vmatprep.mubr.bf16.mxu0 0
        %819 = vmatmul.mubr.bf16.gmra.mxu0 %v532
        %v820 = vpop.f32.mrf.mxu0
        %v821 = vadd.f32 0.0, %v820
        %v822 = vpop.f32.mrf.mxu0
        %v823 = vpop.f32.mrf.mxu0
        %v824 = vadd.f32 0.0, %v823
        %v825 = vpop.f32.mrf.mxu0
        %826 = vdwg.mxu0
        %v829 = vunpack.c.l.b16 %v199
        %v830 = vunpack.c.l.b16 %v200
        %v831 = vpack.c.b16 %v830, %v829
        %v834 = vunpack.c.l.b16 %v267
        %v835 = vunpack.c.l.b16 %v268
        %v836 = vpack.c.b16 %v835, %v834
        %v838 = vsel %vm437, %v831, 0
        %v841 = vsel %vm534, %v836, 0
        %843 = vmatprep.subr.bf16.mxu0 0
        %844 = vmatpush1.bf16.msra.mxu0 0
        %845 = vmatprep.subr.bf16.mxu0 0
        %846 = vmatpush1.bf16.msra.mxu0 0
        %847 = vmatprep.subr.bf16.mxu0 0
        %848 = vmatpush1.bf16.msra.mxu0 0
        %849 = vmatprep.subr.bf16.mxu0 0
        %850 = vmatpush1.bf16.msra.mxu0 0
        %851 = vmatprep.subr.bf16.mxu0 0
        %852 = vmatpush1.bf16.msra.mxu0 0
        %853 = vmatprep.subr.bf16.mxu0 0
        %854 = vmatpush1.bf16.msra.mxu0 0
        %855 = vmatprep.subr.bf16.mxu0 0
        %856 = vmatpush1.bf16.msra.mxu0 0
        %857 = vmatprep.subr.bf16.mxu0 0
        %858 = vmatpush1.bf16.msra.mxu0 %v841
        %859 = vmatprep.subr.bf16.mxu0 0
        %860 = vmatpush2.bf16.msra.mxu0 0
        %861 = vmatprep.subr.bf16.mxu0 0
        %862 = vmatpush2.bf16.msra.mxu0 0
        %863 = vmatprep.subr.bf16.mxu0 0
        %864 = vmatpush2.bf16.msra.mxu0 0
        %865 = vmatprep.subr.bf16.mxu0 0
        %866 = vmatpush2.bf16.msra.mxu0 0
        %867 = vmatprep.subr.bf16.mxu0 0
        %868 = vmatpush2.bf16.msra.mxu0 0
        %869 = vmatprep.subr.bf16.mxu0 0
        %870 = vmatpush2.bf16.msra.mxu0 0
        %871 = vmatprep.subr.bf16.mxu0 0
        %872 = vmatpush2.bf16.msra.mxu0 0
        %873 = vmatprep.subr.bf16.mxu0 0
        %874 = vmatpush2.bf16.msra.mxu0 0
        %875 = vmatprep.mubr.bf16.mxu0 0
        %876 = vmatmul.mubr.bf16.gmra.mxu0 %v838
        %v877 = vpop.f32.mrf.mxu0
        %v878 = vadd.f32 %v573, %v877
        %v879 = vpop.f32.mrf.mxu0
        %v880 = vpop.f32.mrf.mxu0
        %v881 = vadd.f32 %v576, %v880
        %v882 = vpop.f32.mrf.mxu0
        %883 = vmatprep.mubr.bf16.mxu0 0
        %884 = vmatmul.mubr.bf16.gmra.mxu0 %v439
        %v885 = vpop.f32.mrf.mxu0
        %v886 = vadd.f32 %v581, %v885
        %v887 = vpop.f32.mrf.mxu0
        %v888 = vpop.f32.mrf.mxu0
        %v889 = vadd.f32 %v584, %v888
        %v890 = vpop.f32.mrf.mxu0
        %891 = vmatprep.mubr.bf16.mxu0 0
        %892 = vmatmul.mubr.bf16.gmra.mxu0 %v442
        %v893 = vpop.f32.mrf.mxu0
        %v894 = vadd.f32 %v589, %v893
        %v895 = vpop.f32.mrf.mxu0
        %v896 = vpop.f32.mrf.mxu0
        %v897 = vadd.f32 %v592, %v896
        %v898 = vpop.f32.mrf.mxu0
        %899 = vmatprep.mubr.bf16.mxu0 0
        %900 = vmatmul.mubr.bf16.gmra.mxu0 %v445
        %v901 = vpop.f32.mrf.mxu0
        %v902 = vadd.f32 %v597, %v901
        %v903 = vpop.f32.mrf.mxu0
        %v904 = vpop.f32.mrf.mxu0
        %v905 = vadd.f32 %v600, %v904
        %v906 = vpop.f32.mrf.mxu0
        %907 = vmatprep.mubr.bf16.mxu0 0
        %908 = vmatmul.mubr.bf16.gmra.mxu0 %v448
        %v909 = vpop.f32.mrf.mxu0
        %v910 = vadd.f32 %v605, %v909
        %v911 = vpop.f32.mrf.mxu0
        %v912 = vpop.f32.mrf.mxu0
        %v913 = vadd.f32 %v608, %v912
        %v914 = vpop.f32.mrf.mxu0
        %915 = vmatprep.mubr.bf16.mxu0 0
        %916 = vmatmul.mubr.bf16.gmra.mxu0 %v451
        %v917 = vpop.f32.mrf.mxu0
        %v918 = vadd.f32 %v613, %v917
        %v919 = vpop.f32.mrf.mxu0
        %v920 = vpop.f32.mrf.mxu0
        %v921 = vadd.f32 %v616, %v920
        %v922 = vpop.f32.mrf.mxu0
        %923 = vmatprep.mubr.bf16.mxu0 0
        %924 = vmatmul.mubr.bf16.gmra.mxu0 %v454
        %v925 = vpop.f32.mrf.mxu0
        %v926 = vadd.f32 %v621, %v925
        %v927 = vpop.f32.mrf.mxu0
        %v928 = vpop.f32.mrf.mxu0
        %v929 = vadd.f32 %v624, %v928
        %v930 = vpop.f32.mrf.mxu0
        %931 = vmatprep.mubr.bf16.mxu0 0
        %932 = vmatmul.mubr.bf16.gmra.mxu0 %v457
        %v933 = vpop.f32.mrf.mxu0
        %v934 = vadd.f32 %v629, %v933
        %v935 = vpop.f32.mrf.mxu0
        %v936 = vpop.f32.mrf.mxu0
        %v937 = vadd.f32 %v632, %v936
        %v938 = vpop.f32.mrf.mxu0
        %939 = vmatprep.mubr.bf16.mxu0 0
        %940 = vmatmul.mubr.bf16.gmra.mxu0 %v460
        %v941 = vpop.f32.mrf.mxu0
        %v942 = vadd.f32 %v637, %v941
        %v943 = vpop.f32.mrf.mxu0
        %v944 = vpop.f32.mrf.mxu0
        %v945 = vadd.f32 %v640, %v944
        %v946 = vpop.f32.mrf.mxu0
        %947 = vmatprep.mubr.bf16.mxu0 0
        %948 = vmatmul.mubr.bf16.gmra.mxu0 %v463
        %v949 = vpop.f32.mrf.mxu0
        %v950 = vadd.f32 %v645, %v949
        %v951 = vpop.f32.mrf.mxu0
        %v952 = vpop.f32.mrf.mxu0
        %v953 = vadd.f32 %v648, %v952
        %v954 = vpop.f32.mrf.mxu0
        %955 = vmatprep.mubr.bf16.mxu0 0
        %956 = vmatmul.mubr.bf16.gmra.mxu0 %v466
        %v957 = vpop.f32.mrf.mxu0
        %v958 = vadd.f32 %v653, %v957
        %v959 = vpop.f32.mrf.mxu0
        %v960 = vpop.f32.mrf.mxu0
        %v961 = vadd.f32 %v656, %v960
        %v962 = vpop.f32.mrf.mxu0
        %963 = vmatprep.mubr.bf16.mxu0 0
        %964 = vmatmul.mubr.bf16.gmra.mxu0 %v469
        %v965 = vpop.f32.mrf.mxu0
        %v966 = vadd.f32 %v661, %v965
        %v967 = vpop.f32.mrf.mxu0
        %v968 = vpop.f32.mrf.mxu0
        %v969 = vadd.f32 %v664, %v968
        %v970 = vpop.f32.mrf.mxu0
        %971 = vmatprep.mubr.bf16.mxu0 0
        %972 = vmatmul.mubr.bf16.gmra.mxu0 %v472
        %v973 = vpop.f32.mrf.mxu0
        %v974 = vadd.f32 %v669, %v973
        %v975 = vpop.f32.mrf.mxu0
        %v976 = vpop.f32.mrf.mxu0
        %v977 = vadd.f32 %v672, %v976
        %v978 = vpop.f32.mrf.mxu0
        %979 = vmatprep.mubr.bf16.mxu0 0
        %980 = vmatmul.mubr.bf16.gmra.mxu0 %v475
        %v981 = vpop.f32.mrf.mxu0
        %v982 = vadd.f32 %v677, %v981
        %v983 = vpop.f32.mrf.mxu0
        %v984 = vpop.f32.mrf.mxu0
        %v985 = vadd.f32 %v680, %v984
        %v986 = vpop.f32.mrf.mxu0
        %987 = vmatprep.mubr.bf16.mxu0 0
        %988 = vmatmul.mubr.bf16.gmra.mxu0 %v478
        %v989 = vpop.f32.mrf.mxu0
        %v990 = vadd.f32 %v685, %v989
        %v991 = vpop.f32.mrf.mxu0
        %v992 = vpop.f32.mrf.mxu0
        %v993 = vadd.f32 %v688, %v992
        %v994 = vpop.f32.mrf.mxu0
        %995 = vmatprep.mubr.bf16.mxu0 0
        %996 = vmatmul.mubr.bf16.gmra.mxu0 %v481
        %v997 = vpop.f32.mrf.mxu0
        %v998 = vadd.f32 %v693, %v997
        %v999 = vpop.f32.mrf.mxu0
        %v1000 = vpop.f32.mrf.mxu0
        %v1001 = vadd.f32 %v696, %v1000
        %v1002 = vpop.f32.mrf.mxu0
        %1003 = vmatprep.mubr.bf16.mxu0 0
        %1004 = vmatmul.mubr.bf16.gmra.mxu0 %v484
        %v1005 = vpop.f32.mrf.mxu0
        %v1006 = vadd.f32 %v701, %v1005
        %v1007 = vpop.f32.mrf.mxu0
        %v1008 = vpop.f32.mrf.mxu0
        %v1009 = vadd.f32 %v704, %v1008
        %v1010 = vpop.f32.mrf.mxu0
        %1011 = vmatprep.mubr.bf16.mxu0 0
        %1012 = vmatmul.mubr.bf16.gmra.mxu0 %v487
        %v1013 = vpop.f32.mrf.mxu0
        %v1014 = vadd.f32 %v709, %v1013
        %v1015 = vpop.f32.mrf.mxu0
        %v1016 = vpop.f32.mrf.mxu0
        %v1017 = vadd.f32 %v712, %v1016
        %v1018 = vpop.f32.mrf.mxu0
        %1019 = vmatprep.mubr.bf16.mxu0 0
        %1020 = vmatmul.mubr.bf16.gmra.mxu0 %v490
        %v1021 = vpop.f32.mrf.mxu0
        %v1022 = vadd.f32 %v717, %v1021
        %v1023 = vpop.f32.mrf.mxu0
        %v1024 = vpop.f32.mrf.mxu0
        %v1025 = vadd.f32 %v720, %v1024
        %v1026 = vpop.f32.mrf.mxu0
        %1027 = vmatprep.mubr.bf16.mxu0 0
        %1028 = vmatmul.mubr.bf16.gmra.mxu0 %v493
        %v1029 = vpop.f32.mrf.mxu0
        %v1030 = vadd.f32 %v725, %v1029
        %v1031 = vpop.f32.mrf.mxu0
        %v1032 = vpop.f32.mrf.mxu0
        %v1033 = vadd.f32 %v728, %v1032
        %v1034 = vpop.f32.mrf.mxu0
        %1035 = vmatprep.mubr.bf16.mxu0 0
        %1036 = vmatmul.mubr.bf16.gmra.mxu0 %v496
        %v1037 = vpop.f32.mrf.mxu0
        %v1038 = vadd.f32 %v733, %v1037
        %v1039 = vpop.f32.mrf.mxu0
        %v1040 = vpop.f32.mrf.mxu0
        %v1041 = vadd.f32 %v736, %v1040
        %v1042 = vpop.f32.mrf.mxu0
        %1043 = vmatprep.mubr.bf16.mxu0 0
        %1044 = vmatmul.mubr.bf16.gmra.mxu0 %v499
        %v1045 = vpop.f32.mrf.mxu0
        %v1046 = vadd.f32 %v741, %v1045
        %v1047 = vpop.f32.mrf.mxu0
        %v1048 = vpop.f32.mrf.mxu0
        %v1049 = vadd.f32 %v744, %v1048
        %v1050 = vpop.f32.mrf.mxu0
        %1051 = vmatprep.mubr.bf16.mxu0 0
        %1052 = vmatmul.mubr.bf16.gmra.mxu0 %v502
        %v1053 = vpop.f32.mrf.mxu0
        %v1054 = vadd.f32 %v749, %v1053
        %v1055 = vpop.f32.mrf.mxu0
        %v1056 = vpop.f32.mrf.mxu0
        %v1057 = vadd.f32 %v752, %v1056
        %v1058 = vpop.f32.mrf.mxu0
        %1059 = vmatprep.mubr.bf16.mxu0 0
        %1060 = vmatmul.mubr.bf16.gmra.mxu0 %v505
        %v1061 = vpop.f32.mrf.mxu0
        %v1062 = vadd.f32 %v757, %v1061
        %v1063 = vpop.f32.mrf.mxu0
        %v1064 = vpop.f32.mrf.mxu0
        %v1065 = vadd.f32 %v760, %v1064
        %v1066 = vpop.f32.mrf.mxu0
        %1067 = vmatprep.mubr.bf16.mxu0 0
        %1068 = vmatmul.mubr.bf16.gmra.mxu0 %v508
        %v1069 = vpop.f32.mrf.mxu0
        %v1070 = vadd.f32 %v765, %v1069
        %v1071 = vpop.f32.mrf.mxu0
        %v1072 = vpop.f32.mrf.mxu0
        %v1073 = vadd.f32 %v768, %v1072
        %v1074 = vpop.f32.mrf.mxu0
        %1075 = vmatprep.mubr.bf16.mxu0 0
        %1076 = vmatmul.mubr.bf16.gmra.mxu0 %v511
        %v1077 = vpop.f32.mrf.mxu0
        %v1078 = vadd.f32 %v773, %v1077
        %v1079 = vpop.f32.mrf.mxu0
        %v1080 = vpop.f32.mrf.mxu0
        %v1081 = vadd.f32 %v776, %v1080
        %v1082 = vpop.f32.mrf.mxu0
        %1083 = vmatprep.mubr.bf16.mxu0 0
        %1084 = vmatmul.mubr.bf16.gmra.mxu0 %v514
        %v1085 = vpop.f32.mrf.mxu0
        %v1086 = vadd.f32 %v781, %v1085
        %v1087 = vpop.f32.mrf.mxu0
        %v1088 = vpop.f32.mrf.mxu0
        %v1089 = vadd.f32 %v784, %v1088
        %v1090 = vpop.f32.mrf.mxu0
        %1091 = vmatprep.mubr.bf16.mxu0 0
        %1092 = vmatmul.mubr.bf16.gmra.mxu0 %v517
        %v1093 = vpop.f32.mrf.mxu0
        %v1094 = vadd.f32 %v789, %v1093
        %v1095 = vpop.f32.mrf.mxu0
        %v1096 = vpop.f32.mrf.mxu0
        %v1097 = vadd.f32 %v792, %v1096
        %v1098 = vpop.f32.mrf.mxu0
        %1099 = vmatprep.mubr.bf16.mxu0 0
        %1100 = vmatmul.mubr.bf16.gmra.mxu0 %v520
        %v1101 = vpop.f32.mrf.mxu0
        %v1102 = vadd.f32 %v797, %v1101
        %v1103 = vpop.f32.mrf.mxu0
        %v1104 = vpop.f32.mrf.mxu0
        %v1105 = vadd.f32 %v800, %v1104
        %v1106 = vpop.f32.mrf.mxu0
        %1107 = vmatprep.mubr.bf16.mxu0 0
        %1108 = vmatmul.mubr.bf16.gmra.mxu0 %v523
        %v1109 = vpop.f32.mrf.mxu0
        %v1110 = vadd.f32 %v805, %v1109
        %v1111 = vpop.f32.mrf.mxu0
        %v1112 = vpop.f32.mrf.mxu0
        %v1113 = vadd.f32 %v808, %v1112
        %v1114 = vpop.f32.mrf.mxu0
        %1115 = vmatprep.mubr.bf16.mxu0 0
        %1116 = vmatmul.mubr.bf16.gmra.mxu0 %v526
        %v1117 = vpop.f32.mrf.mxu0
        %v1118 = vadd.f32 %v813, %v1117
        %v1119 = vpop.f32.mrf.mxu0
        %v1120 = vpop.f32.mrf.mxu0
        %v1121 = vadd.f32 %v816, %v1120
        %v1122 = vpop.f32.mrf.mxu0
        %1123 = vmatprep.mubr.bf16.mxu0 0
        %1124 = vmatmul.mubr.bf16.gmra.mxu0 %v529
        %v1125 = vpop.f32.mrf.mxu0
        %v1126 = vadd.f32 %v821, %v1125
        %v1127 = vpop.f32.mrf.mxu0
        %v1128 = vpop.f32.mrf.mxu0
        %v1129 = vadd.f32 %v824, %v1128
        %v1130 = vpop.f32.mrf.mxu0
        %1131 = vdwg.mxu0
        %s1132 = scalar_lea.vmem %s1, 16
        %v1133 = vld [vmem:[%s1132] sm:$0xf]
        %v1134 = vld [vmem:[%s1132 + $0x4] sm:$0x3]
        %v1137 = vunpack.c.l.b16 %v265
        %v1138 = vunpack.c.l.b16 %v266
        %v1139 = vpack.c.b16 %v1138, %v1137
        %v1142 = vunpack.c.l.b16 %v1133
        %v1143 = vunpack.c.l.b16 %v1134
        %v1144 = vpack.c.b16 %v1143, %v1142
        %v1146 = vsel %vm437, %v1139, 0
        %v1149 = vsel %vm534, %v1144, 0
        %1151 = vmatprep.subr.bf16.mxu0 0
        %1152 = vmatpush1.bf16.msra.mxu0 0
        %1153 = vmatprep.subr.bf16.mxu0 0
        %1154 = vmatpush1.bf16.msra.mxu0 0
        %1155 = vmatprep.subr.bf16.mxu0 0
        %1156 = vmatpush1.bf16.msra.mxu0 0
        %1157 = vmatprep.subr.bf16.mxu0 0
        %1158 = vmatpush1.bf16.msra.mxu0 0
        %1159 = vmatprep.subr.bf16.mxu0 0
        %1160 = vmatpush1.bf16.msra.mxu0 0
        %1161 = vmatprep.subr.bf16.mxu0 0
        %1162 = vmatpush1.bf16.msra.mxu0 0
        %1163 = vmatprep.subr.bf16.mxu0 0
        %1164 = vmatpush1.bf16.msra.mxu0 0
        %1165 = vmatprep.subr.bf16.mxu0 0
        %1166 = vmatpush1.bf16.msra.mxu0 %v1149
        %1167 = vmatprep.subr.bf16.mxu0 0
        %1168 = vmatpush2.bf16.msra.mxu0 0
        %1169 = vmatprep.subr.bf16.mxu0 0
        %1170 = vmatpush2.bf16.msra.mxu0 0
        %1171 = vmatprep.subr.bf16.mxu0 0
        %1172 = vmatpush2.bf16.msra.mxu0 0
        %1173 = vmatprep.subr.bf16.mxu0 0
        %1174 = vmatpush2.bf16.msra.mxu0 0
        %1175 = vmatprep.subr.bf16.mxu0 0
        %1176 = vmatpush2.bf16.msra.mxu0 0
        %1177 = vmatprep.subr.bf16.mxu0 0
        %1178 = vmatpush2.bf16.msra.mxu0 0
        %1179 = vmatprep.subr.bf16.mxu0 0
        %1180 = vmatpush2.bf16.msra.mxu0 0
        %1181 = vmatprep.subr.bf16.mxu0 0
        %1182 = vmatpush2.bf16.msra.mxu0 0
        %1183 = vmatprep.mubr.bf16.mxu0 0
        %1184 = vmatmul.mubr.bf16.gmra.mxu0 %v442
        %v1185 = vpop.f32.mrf.mxu0
        %v1186 = vadd.f32 0.0, %v1185
        %v1187 = vpop.f32.mrf.mxu0
        %v1188 = vpop.f32.mrf.mxu0
        %v1189 = vadd.f32 0.0, %v1188
        %v1190 = vpop.f32.mrf.mxu0
        %1191 = vmatprep.mubr.bf16.mxu0 0
        %1192 = vmatmul.mubr.bf16.gmra.mxu0 %v445
        %v1193 = vpop.f32.mrf.mxu0
        %v1194 = vadd.f32 0.0, %v1193
        %v1195 = vpop.f32.mrf.mxu0
        %v1196 = vpop.f32.mrf.mxu0
        %v1197 = vadd.f32 0.0, %v1196
        %v1198 = vpop.f32.mrf.mxu0
        %1199 = vmatprep.mubr.bf16.mxu0 0
        %1200 = vmatmul.mubr.bf16.gmra.mxu0 %v448
        %v1201 = vpop.f32.mrf.mxu0
        %v1202 = vadd.f32 0.0, %v1201
        %v1203 = vpop.f32.mrf.mxu0
        %v1204 = vpop.f32.mrf.mxu0
        %v1205 = vadd.f32 0.0, %v1204
        %v1206 = vpop.f32.mrf.mxu0
        %1207 = vmatprep.mubr.bf16.mxu0 0
        %1208 = vmatmul.mubr.bf16.gmra.mxu0 %v451
        %v1209 = vpop.f32.mrf.mxu0
        %v1210 = vadd.f32 0.0, %v1209
        %v1211 = vpop.f32.mrf.mxu0
        %v1212 = vpop.f32.mrf.mxu0
        %v1213 = vadd.f32 0.0, %v1212
        %v1214 = vpop.f32.mrf.mxu0
        %1215 = vmatprep.mubr.bf16.mxu0 0
        %1216 = vmatmul.mubr.bf16.gmra.mxu0 %v454
        %v1217 = vpop.f32.mrf.mxu0
        %v1218 = vadd.f32 0.0, %v1217
        %v1219 = vpop.f32.mrf.mxu0
        %v1220 = vpop.f32.mrf.mxu0
        %v1221 = vadd.f32 0.0, %v1220
        %v1222 = vpop.f32.mrf.mxu0
        %1223 = vmatprep.mubr.bf16.mxu0 0
        %1224 = vmatmul.mubr.bf16.gmra.mxu0 %v457
        %v1225 = vpop.f32.mrf.mxu0
        %v1226 = vadd.f32 0.0, %v1225
        %v1227 = vpop.f32.mrf.mxu0
        %v1228 = vpop.f32.mrf.mxu0
        %v1229 = vadd.f32 0.0, %v1228
        %v1230 = vpop.f32.mrf.mxu0
        %1231 = vmatprep.mubr.bf16.mxu0 0
        %1232 = vmatmul.mubr.bf16.gmra.mxu0 %v460
        %v1233 = vpop.f32.mrf.mxu0
        %v1234 = vadd.f32 0.0, %v1233
        %v1235 = vpop.f32.mrf.mxu0
        %v1236 = vpop.f32.mrf.mxu0
        %v1237 = vadd.f32 0.0, %v1236
        %v1238 = vpop.f32.mrf.mxu0
        %1239 = vmatprep.mubr.bf16.mxu0 0
        %1240 = vmatmul.mubr.bf16.gmra.mxu0 %v463
        %v1241 = vpop.f32.mrf.mxu0
        %v1242 = vadd.f32 0.0, %v1241
        %v1243 = vpop.f32.mrf.mxu0
        %v1244 = vpop.f32.mrf.mxu0
        %v1245 = vadd.f32 0.0, %v1244
        %v1246 = vpop.f32.mrf.mxu0
        %1247 = vmatprep.mubr.bf16.mxu0 0
        %1248 = vmatmul.mubr.bf16.gmra.mxu0 %v466
        %v1249 = vpop.f32.mrf.mxu0
        %v1250 = vadd.f32 0.0, %v1249
        %v1251 = vpop.f32.mrf.mxu0
        %v1252 = vpop.f32.mrf.mxu0
        %v1253 = vadd.f32 0.0, %v1252
        %v1254 = vpop.f32.mrf.mxu0
        %1255 = vmatprep.mubr.bf16.mxu0 0
        %1256 = vmatmul.mubr.bf16.gmra.mxu0 %v469
        %v1257 = vpop.f32.mrf.mxu0
        %v1258 = vadd.f32 0.0, %v1257
        %v1259 = vpop.f32.mrf.mxu0
        %v1260 = vpop.f32.mrf.mxu0
        %v1261 = vadd.f32 0.0, %v1260
        %v1262 = vpop.f32.mrf.mxu0
        %1263 = vmatprep.mubr.bf16.mxu0 0
        %1264 = vmatmul.mubr.bf16.gmra.mxu0 %v472
        %v1265 = vpop.f32.mrf.mxu0
        %v1266 = vadd.f32 0.0, %v1265
        %v1267 = vpop.f32.mrf.mxu0
        %v1268 = vpop.f32.mrf.mxu0
        %v1269 = vadd.f32 0.0, %v1268
        %v1270 = vpop.f32.mrf.mxu0
        %1271 = vmatprep.mubr.bf16.mxu0 0
        %1272 = vmatmul.mubr.bf16.gmra.mxu0 %v475
        %v1273 = vpop.f32.mrf.mxu0
        %v1274 = vadd.f32 0.0, %v1273
        %v1275 = vpop.f32.mrf.mxu0
        %v1276 = vpop.f32.mrf.mxu0
        %v1277 = vadd.f32 0.0, %v1276
        %v1278 = vpop.f32.mrf.mxu0
        %1279 = vmatprep.mubr.bf16.mxu0 0
        %1280 = vmatmul.mubr.bf16.gmra.mxu0 %v478
        %v1281 = vpop.f32.mrf.mxu0
        %v1282 = vadd.f32 0.0, %v1281
        %v1283 = vpop.f32.mrf.mxu0
        %v1284 = vpop.f32.mrf.mxu0
        %v1285 = vadd.f32 0.0, %v1284
        %v1286 = vpop.f32.mrf.mxu0
        %1287 = vmatprep.mubr.bf16.mxu0 0
        %1288 = vmatmul.mubr.bf16.gmra.mxu0 %v481
        %v1289 = vpop.f32.mrf.mxu0
        %v1290 = vadd.f32 0.0, %v1289
        %v1291 = vpop.f32.mrf.mxu0
        %v1292 = vpop.f32.mrf.mxu0
        %v1293 = vadd.f32 0.0, %v1292
        %v1294 = vpop.f32.mrf.mxu0
        %1295 = vmatprep.mubr.bf16.mxu0 0
        %1296 = vmatmul.mubr.bf16.gmra.mxu0 %v484
        %v1297 = vpop.f32.mrf.mxu0
        %v1298 = vadd.f32 0.0, %v1297
        %v1299 = vpop.f32.mrf.mxu0
        %v1300 = vpop.f32.mrf.mxu0
        %v1301 = vadd.f32 0.0, %v1300
        %v1302 = vpop.f32.mrf.mxu0
        %1303 = vmatprep.mubr.bf16.mxu0 0
        %1304 = vmatmul.mubr.bf16.gmra.mxu0 %v487
        %v1305 = vpop.f32.mrf.mxu0
        %v1306 = vadd.f32 0.0, %v1305
        %v1307 = vpop.f32.mrf.mxu0
        %v1308 = vpop.f32.mrf.mxu0
        %v1309 = vadd.f32 0.0, %v1308
        %v1310 = vpop.f32.mrf.mxu0
        %1311 = vmatprep.mubr.bf16.mxu0 0
        %1312 = vmatmul.mubr.bf16.gmra.mxu0 %v490
        %v1313 = vpop.f32.mrf.mxu0
        %v1314 = vadd.f32 0.0, %v1313
        %v1315 = vpop.f32.mrf.mxu0
        %v1316 = vpop.f32.mrf.mxu0
        %v1317 = vadd.f32 0.0, %v1316
        %v1318 = vpop.f32.mrf.mxu0
        %1319 = vmatprep.mubr.bf16.mxu0 0
        %1320 = vmatmul.mubr.bf16.gmra.mxu0 %v493
        %v1321 = vpop.f32.mrf.mxu0
        %v1322 = vadd.f32 0.0, %v1321
        %v1323 = vpop.f32.mrf.mxu0
        %v1324 = vpop.f32.mrf.mxu0
        %v1325 = vadd.f32 0.0, %v1324
        %v1326 = vpop.f32.mrf.mxu0
        %1327 = vmatprep.mubr.bf16.mxu0 0
        %1328 = vmatmul.mubr.bf16.gmra.mxu0 %v496
        %v1329 = vpop.f32.mrf.mxu0
        %v1330 = vadd.f32 0.0, %v1329
        %v1331 = vpop.f32.mrf.mxu0
        %v1332 = vpop.f32.mrf.mxu0
        %v1333 = vadd.f32 0.0, %v1332
        %v1334 = vpop.f32.mrf.mxu0
        %1335 = vmatprep.mubr.bf16.mxu0 0
        %1336 = vmatmul.mubr.bf16.gmra.mxu0 %v499
        %v1337 = vpop.f32.mrf.mxu0
        %v1338 = vadd.f32 0.0, %v1337
        %v1339 = vpop.f32.mrf.mxu0
        %v1340 = vpop.f32.mrf.mxu0
        %v1341 = vadd.f32 0.0, %v1340
        %v1342 = vpop.f32.mrf.mxu0
        %1343 = vmatprep.mubr.bf16.mxu0 0
        %1344 = vmatmul.mubr.bf16.gmra.mxu0 %v502
        %v1345 = vpop.f32.mrf.mxu0
        %v1346 = vadd.f32 0.0, %v1345
        %v1347 = vpop.f32.mrf.mxu0
        %v1348 = vpop.f32.mrf.mxu0
        %v1349 = vadd.f32 0.0, %v1348
        %v1350 = vpop.f32.mrf.mxu0
        %1351 = vmatprep.mubr.bf16.mxu0 0
        %1352 = vmatmul.mubr.bf16.gmra.mxu0 %v505
        %v1353 = vpop.f32.mrf.mxu0
        %v1354 = vadd.f32 0.0, %v1353
        %v1355 = vpop.f32.mrf.mxu0
        %v1356 = vpop.f32.mrf.mxu0
        %v1357 = vadd.f32 0.0, %v1356
        %v1358 = vpop.f32.mrf.mxu0
        %1359 = vmatprep.mubr.bf16.mxu0 0
        %1360 = vmatmul.mubr.bf16.gmra.mxu0 %v508
        %v1361 = vpop.f32.mrf.mxu0
        %v1362 = vadd.f32 0.0, %v1361
        %v1363 = vpop.f32.mrf.mxu0
        %v1364 = vpop.f32.mrf.mxu0
        %v1365 = vadd.f32 0.0, %v1364
        %v1366 = vpop.f32.mrf.mxu0
        %1367 = vmatprep.mubr.bf16.mxu0 0
        %1368 = vmatmul.mubr.bf16.gmra.mxu0 %v511
        %v1369 = vpop.f32.mrf.mxu0
        %v1370 = vadd.f32 0.0, %v1369
        %v1371 = vpop.f32.mrf.mxu0
        %v1372 = vpop.f32.mrf.mxu0
        %v1373 = vadd.f32 0.0, %v1372
        %v1374 = vpop.f32.mrf.mxu0
        %1375 = vmatprep.mubr.bf16.mxu0 0
        %1376 = vmatmul.mubr.bf16.gmra.mxu0 %v514
        %v1377 = vpop.f32.mrf.mxu0
        %v1378 = vadd.f32 0.0, %v1377
        %v1379 = vpop.f32.mrf.mxu0
        %v1380 = vpop.f32.mrf.mxu0
        %v1381 = vadd.f32 0.0, %v1380
        %v1382 = vpop.f32.mrf.mxu0
        %1383 = vmatprep.mubr.bf16.mxu0 0
        %1384 = vmatmul.mubr.bf16.gmra.mxu0 %v517
        %v1385 = vpop.f32.mrf.mxu0
        %v1386 = vadd.f32 0.0, %v1385
        %v1387 = vpop.f32.mrf.mxu0
        %v1388 = vpop.f32.mrf.mxu0
        %v1389 = vadd.f32 0.0, %v1388
        %v1390 = vpop.f32.mrf.mxu0
        %1391 = vmatprep.mubr.bf16.mxu0 0
        %1392 = vmatmul.mubr.bf16.gmra.mxu0 %v520
        %v1393 = vpop.f32.mrf.mxu0
        %v1394 = vadd.f32 0.0, %v1393
        %v1395 = vpop.f32.mrf.mxu0
        %v1396 = vpop.f32.mrf.mxu0
        %v1397 = vadd.f32 0.0, %v1396
        %v1398 = vpop.f32.mrf.mxu0
        %1399 = vmatprep.mubr.bf16.mxu0 0
        %1400 = vmatmul.mubr.bf16.gmra.mxu0 %v523
        %v1401 = vpop.f32.mrf.mxu0
        %v1402 = vadd.f32 0.0, %v1401
        %v1403 = vpop.f32.mrf.mxu0
        %v1404 = vpop.f32.mrf.mxu0
        %v1405 = vadd.f32 0.0, %v1404
        %v1406 = vpop.f32.mrf.mxu0
        %1407 = vmatprep.mubr.bf16.mxu0 0
        %1408 = vmatmul.mubr.bf16.gmra.mxu0 %v526
        %v1409 = vpop.f32.mrf.mxu0
        %v1410 = vadd.f32 0.0, %v1409
        %v1411 = vpop.f32.mrf.mxu0
        %v1412 = vpop.f32.mrf.mxu0
        %v1413 = vadd.f32 0.0, %v1412
        %v1414 = vpop.f32.mrf.mxu0
        %1415 = vmatprep.mubr.bf16.mxu0 0
        %1416 = vmatmul.mubr.bf16.gmra.mxu0 %v529
        %v1417 = vpop.f32.mrf.mxu0
        %v1418 = vadd.f32 0.0, %v1417
        %v1419 = vpop.f32.mrf.mxu0
        %v1420 = vpop.f32.mrf.mxu0
        %v1421 = vadd.f32 0.0, %v1420
        %v1422 = vpop.f32.mrf.mxu0
        %1423 = vmatprep.mubr.bf16.mxu0 0
        %1424 = vmatmul.mubr.bf16.gmra.mxu0 %v532
        %v1425 = vpop.f32.mrf.mxu0
        %v1426 = vadd.f32 0.0, %v1425
        %v1427 = vpop.f32.mrf.mxu0
        %v1428 = vpop.f32.mrf.mxu0
        %v1429 = vadd.f32 0.0, %v1428
        %v1430 = vpop.f32.mrf.mxu0
        %1431 = vmatprep.mubr.bf16.mxu0 0
        %1432 = vmatmul.mubr.bf16.gmra.mxu0 %v1146
        %v1433 = vpop.f32.mrf.mxu0
        %v1434 = vadd.f32 0.0, %v1433
        %v1435 = vpop.f32.mrf.mxu0
        %v1436 = vpop.f32.mrf.mxu0
        %v1437 = vadd.f32 0.0, %v1436
        %v1438 = vpop.f32.mrf.mxu0
        %1439 = vdwg.mxu0
        %v1440 = vadd.f32 %v878, %v1186
        %v1441 = vadd.f32 %v881, %v1189
        %v1442 = vadd.f32 %v886, %v1194
        %v1443 = vadd.f32 %v889, %v1197
        %v1444 = vadd.f32 %v894, %v1202
        %v1445 = vadd.f32 %v897, %v1205
        %v1446 = vadd.f32 %v902, %v1210
        %v1447 = vadd.f32 %v905, %v1213
        %v1448 = vadd.f32 %v910, %v1218
        %v1449 = vadd.f32 %v913, %v1221
        %v1450 = vadd.f32 %v918, %v1226
        %v1451 = vadd.f32 %v921, %v1229
        %v1452 = vadd.f32 %v926, %v1234
        %v1453 = vadd.f32 %v929, %v1237
        %v1454 = vadd.f32 %v934, %v1242
        %v1455 = vadd.f32 %v937, %v1245
        %v1456 = vadd.f32 %v942, %v1250
        %v1457 = vadd.f32 %v945, %v1253
        %v1458 = vadd.f32 %v950, %v1258
        %v1459 = vadd.f32 %v953, %v1261
        %v1460 = vadd.f32 %v958, %v1266
        %v1461 = vadd.f32 %v961, %v1269
        %v1462 = vadd.f32 %v966, %v1274
        %v1463 = vadd.f32 %v969, %v1277
        %v1464 = vadd.f32 %v974, %v1282
        %v1465 = vadd.f32 %v977, %v1285
        %v1466 = vadd.f32 %v982, %v1290
        %v1467 = vadd.f32 %v985, %v1293
        %v1468 = vadd.f32 %v990, %v1298
        %v1469 = vadd.f32 %v993, %v1301
        %v1470 = vadd.f32 %v998, %v1306
        %v1471 = vadd.f32 %v1001, %v1309
        %v1472 = vadd.f32 %v1006, %v1314
        %v1473 = vadd.f32 %v1009, %v1317
        %v1474 = vadd.f32 %v1014, %v1322
        %v1475 = vadd.f32 %v1017, %v1325
        %v1476 = vadd.f32 %v1022, %v1330
        %v1477 = vadd.f32 %v1025, %v1333
        %v1478 = vadd.f32 %v1030, %v1338
        %v1479 = vadd.f32 %v1033, %v1341
        %v1480 = vadd.f32 %v1038, %v1346
        %v1481 = vadd.f32 %v1041, %v1349
        %v1482 = vadd.f32 %v1046, %v1354
        %v1483 = vadd.f32 %v1049, %v1357
        %v1484 = vadd.f32 %v1054, %v1362
        %v1485 = vadd.f32 %v1057, %v1365
        %v1486 = vadd.f32 %v1062, %v1370
        %v1487 = vadd.f32 %v1065, %v1373
        %v1488 = vadd.f32 %v1070, %v1378
        %v1489 = vadd.f32 %v1073, %v1381
        %v1490 = vadd.f32 %v1078, %v1386
        %v1491 = vadd.f32 %v1081, %v1389
        %v1492 = vadd.f32 %v1086, %v1394
        %v1493 = vadd.f32 %v1089, %v1397
        %v1494 = vadd.f32 %v1094, %v1402
        %v1495 = vadd.f32 %v1097, %v1405
        %v1496 = vadd.f32 %v1102, %v1410
        %v1497 = vadd.f32 %v1105, %v1413
        %v1498 = vadd.f32 %v1110, %v1418
        %v1499 = vadd.f32 %v1113, %v1421
        %v1500 = vadd.f32 %v1118, %v1426
        %v1501 = vadd.f32 %v1121, %v1429
        %v1502 = vadd.f32 %v1126, %v1434
        %v1503 = vadd.f32 %v1129, %v1437
        %v1504 = vld [vmem:[%s2] sm:$0x1]
        %v1506 = vlaneseq
        %v1507 = vshrl.u32 %v1506, 7
        %v1508 = vsub.s32 0, %v1507
        %v1509 = vrot.slane %v1504, %v1508
        %v1511 = vadd.f32 %v1440, %v1509
        %v1512 = vadd.f32 %v1441, %v1509
        %v1513 = vadd.f32 %v1442, %v1509
        %v1514 = vadd.f32 %v1443, %v1509
        %v1515 = vadd.f32 %v1444, %v1509
        %v1516 = vadd.f32 %v1445, %v1509
        %v1517 = vadd.f32 %v1446, %v1509
        %v1518 = vadd.f32 %v1447, %v1509
        %v1519 = vadd.f32 %v1448, %v1509
        %v1520 = vadd.f32 %v1449, %v1509
        %v1521 = vadd.f32 %v1450, %v1509
        %v1522 = vadd.f32 %v1451, %v1509
        %v1523 = vadd.f32 %v1452, %v1509
        %v1524 = vadd.f32 %v1453, %v1509
        %v1525 = vadd.f32 %v1454, %v1509
        %v1526 = vadd.f32 %v1455, %v1509
        %v1527 = vadd.f32 %v1456, %v1509
        %v1528 = vadd.f32 %v1457, %v1509
        %v1529 = vadd.f32 %v1458, %v1509
        %v1530 = vadd.f32 %v1459, %v1509
        %v1531 = vadd.f32 %v1460, %v1509
        %v1532 = vadd.f32 %v1461, %v1509
        %v1533 = vadd.f32 %v1462, %v1509
        %v1534 = vadd.f32 %v1463, %v1509
        %v1535 = vadd.f32 %v1464, %v1509
        %v1536 = vadd.f32 %v1465, %v1509
        %v1537 = vadd.f32 %v1466, %v1509
        %v1538 = vadd.f32 %v1467, %v1509
        %v1539 = vadd.f32 %v1468, %v1509
        %v1540 = vadd.f32 %v1469, %v1509
        %v1541 = vadd.f32 %v1470, %v1509
        %v1542 = vadd.f32 %v1471, %v1509
        %v1543 = vadd.f32 %v1472, %v1509
        %v1544 = vadd.f32 %v1473, %v1509
        %v1545 = vadd.f32 %v1474, %v1509
        %v1546 = vadd.f32 %v1475, %v1509
        %v1547 = vadd.f32 %v1476, %v1509
        %v1548 = vadd.f32 %v1477, %v1509
        %v1549 = vadd.f32 %v1478, %v1509
        %v1550 = vadd.f32 %v1479, %v1509
        %v1551 = vadd.f32 %v1480, %v1509
        %v1552 = vadd.f32 %v1481, %v1509
        %v1553 = vadd.f32 %v1482, %v1509
        %v1554 = vadd.f32 %v1483, %v1509
        %v1555 = vadd.f32 %v1484, %v1509
        %v1556 = vadd.f32 %v1485, %v1509
        %v1557 = vadd.f32 %v1486, %v1509
        %v1558 = vadd.f32 %v1487, %v1509
        %v1559 = vadd.f32 %v1488, %v1509
        %v1560 = vadd.f32 %v1489, %v1509
        %v1561 = vadd.f32 %v1490, %v1509
        %v1562 = vadd.f32 %v1491, %v1509
        %v1563 = vadd.f32 %v1492, %v1509
        %v1564 = vadd.f32 %v1493, %v1509
        %v1565 = vadd.f32 %v1494, %v1509
        %v1566 = vadd.f32 %v1495, %v1509
        %v1567 = vadd.f32 %v1496, %v1509
        %v1568 = vadd.f32 %v1497, %v1509
        %v1569 = vadd.f32 %v1498, %v1509
        %v1570 = vadd.f32 %v1499, %v1509
        %v1571 = vadd.f32 %v1500, %v1509
        %v1572 = vadd.f32 %v1501, %v1509
        %v1573 = vadd.f32 %v1502, %v1509
        %v1574 = vadd.f32 %v1503, %v1509
        %1575 = vst [vmem:[%s187] sm:$0xff] %v1511
        %1576 = vst [vmem:[%s187 + $0x8] sm:$0xff] %v1512
        %1577 = vst [vmem:[%s187 + $0x10] sm:$0xff] %v1513
        %1578 = vst [vmem:[%s187 + $0x18] sm:$0xff] %v1514
        %1579 = vst [vmem:[%s187 + $0x20] sm:$0xff] %v1515
        %1580 = vst [vmem:[%s187 + $0x28] sm:$0xff] %v1516
        %1581 = vst [vmem:[%s187 + $0x30] sm:$0xff] %v1517
        %1582 = vst [vmem:[%s187 + $0x38] sm:$0xff] %v1518
        %1583 = vst [vmem:[%s187 + $0x40] sm:$0xff] %v1519
        %1584 = vst [vmem:[%s187 + $0x48] sm:$0xff] %v1520
        %1585 = vst [vmem:[%s187 + $0x50] sm:$0xff] %v1521
        %1586 = vst [vmem:[%s187 + $0x58] sm:$0xff] %v1522
        %1587 = vst [vmem:[%s187 + $0x60] sm:$0xff] %v1523
        %1588 = vst [vmem:[%s187 + $0x68] sm:$0xff] %v1524
        %1589 = vst [vmem:[%s187 + $0x70] sm:$0xff] %v1525
        %1590 = vst [vmem:[%s187 + $0x78] sm:$0xff] %v1526
        %1591 = vst [vmem:[%s187 + $0x80] sm:$0xff] %v1527
        %1592 = vst [vmem:[%s187 + $0x88] sm:$0xff] %v1528
        %1593 = vst [vmem:[%s187 + $0x90] sm:$0xff] %v1529
        %1594 = vst [vmem:[%s187 + $0x98] sm:$0xff] %v1530
        %1595 = vst [vmem:[%s187 + $0xa0] sm:$0xff] %v1531
        %1596 = vst [vmem:[%s187 + $0xa8] sm:$0xff] %v1532
        %1597 = vst [vmem:[%s187 + $0xb0] sm:$0xff] %v1533
        %1598 = vst [vmem:[%s187 + $0xb8] sm:$0xff] %v1534
        %1599 = vst [vmem:[%s187 + $0xc0] sm:$0xff] %v1535
        %1600 = vst [vmem:[%s187 + $0xc8] sm:$0xff] %v1536
        %1601 = vst [vmem:[%s187 + $0xd0] sm:$0xff] %v1537
        %1602 = vst [vmem:[%s187 + $0xd8] sm:$0xff] %v1538
        %1603 = vst [vmem:[%s187 + $0xe0] sm:$0xff] %v1539
        %1604 = vst [vmem:[%s187 + $0xe8] sm:$0xff] %v1540
        %1605 = vst [vmem:[%s187 + $0xf0] sm:$0xff] %v1541
        %1606 = vst [vmem:[%s187 + $0xf8] sm:$0xff] %v1542
        %1607 = vst [vmem:[%s187 + $0x100] sm:$0xff] %v1543
        %1608 = vst [vmem:[%s187 + $0x108] sm:$0xff] %v1544
        %1609 = vst [vmem:[%s187 + $0x110] sm:$0xff] %v1545
        %1610 = vst [vmem:[%s187 + $0x118] sm:$0xff] %v1546
        %1611 = vst [vmem:[%s187 + $0x120] sm:$0xff] %v1547
        %1612 = vst [vmem:[%s187 + $0x128] sm:$0xff] %v1548
        %1613 = vst [vmem:[%s187 + $0x130] sm:$0xff] %v1549
        %1614 = vst [vmem:[%s187 + $0x138] sm:$0xff] %v1550
        %1615 = vst [vmem:[%s187 + $0x140] sm:$0xff] %v1551
        %1616 = vst [vmem:[%s187 + $0x148] sm:$0xff] %v1552
        %1617 = vst [vmem:[%s187 + $0x150] sm:$0xff] %v1553
        %1618 = vst [vmem:[%s187 + $0x158] sm:$0xff] %v1554
        %1619 = vst [vmem:[%s187 + $0x160] sm:$0xff] %v1555
        %1620 = vst [vmem:[%s187 + $0x168] sm:$0xff] %v1556
        %1621 = vst [vmem:[%s187 + $0x170] sm:$0xff] %v1557
        %1622 = vst [vmem:[%s187 + $0x178] sm:$0xff] %v1558
        %1623 = vst [vmem:[%s187 + $0x180] sm:$0xff] %v1559
        %1624 = vst [vmem:[%s187 + $0x188] sm:$0xff] %v1560
        %1625 = vst [vmem:[%s187 + $0x190] sm:$0xff] %v1561
        %1626 = vst [vmem:[%s187 + $0x198] sm:$0xff] %v1562
        %1627 = vst [vmem:[%s187 + $0x1a0] sm:$0xff] %v1563
        %1628 = vst [vmem:[%s187 + $0x1a8] sm:$0xff] %v1564
        %1629 = vst [vmem:[%s187 + $0x1b0] sm:$0xff] %v1565
        %1630 = vst [vmem:[%s187 + $0x1b8] sm:$0xff] %v1566
        %1631 = vst [vmem:[%s187 + $0x1c0] sm:$0xff] %v1567
        %1632 = vst [vmem:[%s187 + $0x1c8] sm:$0xff] %v1568
        %1633 = vst [vmem:[%s187 + $0x1d0] sm:$0xff] %v1569
        %1634 = vst [vmem:[%s187 + $0x1d8] sm:$0xff] %v1570
        %1635 = vst [vmem:[%s187 + $0x1e0] sm:$0xff] %v1571
        %1636 = vst [vmem:[%s187 + $0x1e8] sm:$0xff] %v1572
        %1637 = vst [vmem:[%s187 + $0x1f0] sm:$0xff] %v1573
        %1638 = vst [vmem:[%s187 + $0x1f8] sm:$0xff] %v1574
        %s1639 = sand.u32 %s111, 1
        %s1640 = scalar_lea.sflag [#allocation3], %s1639
        %s1641 = sand.u32 %s111, 1
        %s1642 = smul.addr %s1641, 512
        %s1643 = scalar_lea.vmem [#allocation2], %s1642
        // Predicated region
        $region33: #{tpu_custom_call.1} parent=31 // pred_check
          %p1644 = pneg %p121
        $region34: #{tpu_custom_call.1} parent=31 // pred_check_branch
          %1646 = sbr.rel (%p1644) target = $region36
        $region35: #{tpu_custom_call.1} parent=31 // pred_region
          #allocation5 [shape = 'u32[6]{0}', space=smem, size = 0x18, scoped, tag = 'DMA stride descriptor']
          %s1647 = smul.u32 2, %s22
          %s1649 = ssub.s32 8192, 8192
          %1650 = vsyncadd %s1640, %s1649
          %s1651 = smul.addr %s21, 128
          %s1652 = sadd.s32 %s1647, %s1651
          %s1653 = smul.addr %s1652, 128
          %s1654 = scalar_lea.hbm %s3, %s1653
          %s1656 = sshll.u32 1, 14
          %s1657 = sxor.u32 4294967295, %s1656
          %s1660 = sshll.u32 7, 18
          %s1661 = sxor.u32 4294967295, %s1660
          %s1662 = sand.u32 0, %s1661
          %s1664 = sor.u32 %s1662, 0
          %s1665 = sshll.u32 %s1643, 4
          %s1666 = int_to_ptr.vmem [resolvable:$true] %s1665
          %1672 = sst [smem:[#allocation5]] 256
          %s1673 = scalar_lea.smem [#allocation5], 1
          %1674 = sst [smem:[%s1673]] 512
          %s1675 = scalar_lea.smem [#allocation5], 2
          %1676 = sst [smem:[%s1675]] 2
          %s1677 = scalar_lea.smem [#allocation5], 3
          %1678 = sst [smem:[%s1677]] 128
          %s1679 = scalar_lea.smem [#allocation5], 4
          %1680 = sst [smem:[%s1679]] 128
          %s1681 = scalar_lea.smem [#allocation5], 5
          %1682 = sst [smem:[%s1681]] 8
          %1684 = dma.general %s1666, 8192, %s1654, %s1640, 131072, [#allocation5], %s1664, 0
        $region36: #{tpu_custom_call.1} parent=31 // pred_fallthru
          _
      $region32: #{tpu_custom_call.1} parent=5 // pred_fallthru
        _
      %p1685 = scmp.le.s32.totalorder 2, %s12
      // Predicated region
      $region37: #{tpu_custom_call.1} parent=5 // pred_check
        %p1686 = pneg %p1685
      $region38: #{tpu_custom_call.1} parent=5 // pred_check_branch
        %1688 = sbr.rel (%p1686) target = $region40
      $region39: #{tpu_custom_call.1} parent=5 // pred_region
        %s1689 = ssub.s32 %s12, 2
        // Predicated region
        $region41: #{tpu_custom_call.1} parent=39 // pred_check
          %p1690 = pneg %p127
        $region42: #{tpu_custom_call.1} parent=39 // pred_check_branch
          %1692 = sbr.rel (%p1690) target = $region44
        $region43: #{tpu_custom_call.1} parent=39 // pred_region
          %s1693 = sand.u32 %s112, 1
          %s1694 = scalar_lea.sflag [#allocation3], %s1693
          %s1695 = sand.u32 %s112, 1
          %s1696 = smul.addr %s1695, 512
          %s1697 = scalar_lea.vmem [#allocation2], %s1696
          %1698 = dma.done %s1694, 8192
        $region44: #{tpu_custom_call.1} parent=39 // pred_fallthru
          _
      $region40: #{tpu_custom_call.1} parent=5 // pred_fallthru
        _
    $region6: #{tpu_custom_call.1} parent=1 // loop_footer
      %s16 = sadd.s32 1, %s12
    $region7: #{tpu_custom_call.1} parent=1 // loop_footer_branch
      %11 = sbr.rel target = $region3
    $region8: #{tpu_custom_call.1} parent=1 // loop_exit
      _
    %1699 = vsyncpa [#allocation3], 1
    %s1700 = scalar_lea.sflag [#allocation3], 1
    %1701 = vsyncpa %s1700, 1

</llo_original>
